<compile_context>
chip_gen: v5e
topology: v5e:2x2
jax: 0.10.0
libtpu: 0.0.40
codegen_flags: <defaults>
</compile_context>

<pallas_src>
import jax
import jax.numpy as jnp
from jax.experimental import pallas as pl
from jax.experimental.pallas import tpu as pltpu

HIDDEN = 768
NUM_LABELS = 2
PAD_LABELS = 128          # lane-dense classifier output width (zero-padded)


def _round_up(x, m):
    return ((x + m - 1) // m) * m


def _bert_head_kernel(ids_ref, emb_hbm, wp_ref, bp_ref, wc_ref, bc_ref, o_ref,
                      h_buf, dma_sem):
    """Fused [CLS] gather + pooler (dense + tanh) + padded classifier linear.

    ids_ref : [Bp]              i32  SMEM  scalar-prefetched [CLS] token ids
    emb_hbm : [vocab, 768]      f32  HBM   embedding table (manual row DMA)
    wp_ref  : [768, 768]        bf16 VMEM  pooler weight (pinned, VMEM-resident)
    bp_ref  : [1, 768]          f32  VMEM  pooler bias
    wc_ref  : [768, PAD_LABELS] bf16 VMEM  classifier weight (zero-padded cols)
    bc_ref  : [1, PAD_LABELS]   f32  VMEM  classifier bias  (zero-padded)
    o_ref   : [TB, PAD_LABELS]  bf16       padded logits (lane-dense store)
    h_buf   : [TB, 768]         f32  VMEM  gathered [CLS] hidden rows (scratch)
    dma_sem :                   DMA sem for the row gather
    """
    TB = o_ref.shape[0]
    base = pl.program_id(0) * TB

    # ---- DMA gather of TB embedding rows (data-dependent, ids from SMEM) ----
    @pl.loop(0, TB)
    def _start(r):
        tok = ids_ref[base + r]
        pltpu.make_async_copy(
            emb_hbm.at[pl.ds(tok, 1), :], h_buf.at[pl.ds(r, 1), :], dma_sem
        ).start()

    @pl.loop(0, TB)
    def _wait(r):
        # descriptor only needs matching shape/semaphore for the wait
        pltpu.make_async_copy(
            emb_hbm.at[pl.ds(0, 1), :], h_buf.at[pl.ds(0, 1), :], dma_sem
        ).wait()

    # ---- pooler: tanh(h_cls @ W_p + b_p), bf16 MXU operands, f32 accumulate --
    h = h_buf[...].astype(jnp.bfloat16)                       # [TB, 768] bf16
    acc = (jnp.dot(h, wp_ref[...], preferred_element_type=jnp.float32)
           + bp_ref[...])                                     # [TB, 768] f32
    pooled = jnp.tanh(acc.astype(jnp.bfloat16))               # bf16 tanh (EUP)

    # ---- classifier head: Linear(768 -> 2) padded to 128 lanes, bf16 MXU ----
    logits = (jnp.dot(pooled, wc_ref[...], preferred_element_type=jnp.float32)
              + bc_ref[...])                                  # [TB, 128] f32
    o_ref[...] = logits.astype(o_ref.dtype)


def bert_classifier_forward(input_ids, params, labels=None, *, batch_tile=256):
    """input_ids: [B, S] int32 token ids.  Returns logits [B, 2] (f32).

    `labels` is accepted for signature parity with the PyTorch forward and
    ignored (the module does not use it in forward).
    """
    del labels
    emb = params["embedding"]               # [vocab, 768] f32 (stays in HBM)
    wp = params["pooler_w"]                 # [768, 768]   bf16
    bp = params["pooler_b"]                 # [1, 768]     f32
    wc_p = params["classifier_w_padded"]    # [768, 128]   bf16 (padded at init)
    bc_p = params["classifier_b_padded"]    # [1, 128]     f32  (padded at init)

    B = input_ids.shape[0]

    # Batch tiling: >= 2 grid steps when the batch is big enough (v7x has 2
    # TensorCores), tile rows rounded to a bf16-sublane-friendly multiple of 16
    # and capped at batch_tile (256 feeds the 256-wide MXU on v6e/v7x).
    rows_per_step = -(-B // 2) if B > 16 else B
    TB = min(batch_tile, _round_up(max(rows_per_step, 1), 16))
    Bp = _round_up(B, TB)

    # [CLS] token ids for the in-kernel gather; pad with token 0 (valid row,
    # padded output rows are sliced off below).
    cls_ids = input_ids[:, 0].astype(jnp.int32)
    if Bp != B:
        cls_ids = jnp.pad(cls_ids, (0, Bp - B))

    grid = (Bp // TB,)
    out = pl.pallas_call(
        _bert_head_kernel,
        out_shape=jax.ShapeDtypeStruct((Bp, PAD_LABELS), jnp.bfloat16),
        grid_spec=pltpu.PrefetchScalarGridSpec(
            num_scalar_prefetch=1,          # cls_ids -> SMEM, passed to index_maps
            grid=grid,
            in_specs=[
                # embedding table stays in HBM; rows DMA-gathered in the kernel
                pl.BlockSpec(memory_space=pl.ANY),
                # weights / biases pinned to block (0,0) -> stay VMEM-resident
                pl.BlockSpec((HIDDEN, HIDDEN), lambda i, ids: (0, 0)),
                pl.BlockSpec((1, HIDDEN), lambda i, ids: (0, 0)),
                pl.BlockSpec((HIDDEN, PAD_LABELS), lambda i, ids: (0, 0)),
                pl.BlockSpec((1, PAD_LABELS), lambda i, ids: (0, 0)),
            ],
            out_specs=pl.BlockSpec((TB, PAD_LABELS), lambda i, ids: (i, 0)),
            scratch_shapes=[
                pltpu.VMEM((TB, HIDDEN), jnp.float32),   # gathered [CLS] rows
                pltpu.SemaphoreType.DMA(()),             # gather DMA semaphore
            ],
        ),
        compiler_params=pltpu.CompilerParams(
            dimension_semantics=("parallel",),
            vmem_limit_bytes=32 * 1024 * 1024,
        ),
    )(cls_ids, emb, wp, bp, wc_p, bc_p)

    return out[:B, :NUM_LABELS].astype(jnp.float32)


def init_params(key, vocab_size):
    k_emb, k_pw, k_cw, k_cb = jax.random.split(key, 4)
    classifier_w = 0.02 * jax.random.normal(k_cw, (HIDDEN, NUM_LABELS), jnp.float32)
    # nn.init.normal_(bias, 0) -> mean 0, std 1 (explicit override of nn.Linear's
    # default uniform bias init)
    classifier_b = jax.random.normal(k_cb, (1, NUM_LABELS), jnp.float32)
    params = {
        # stand-in embedding table for the pretrained model (f32: single-row DMA
        # friendly; see TODO about packing bf16 rows)
        "embedding": 0.02 * jax.random.normal(k_emb, (vocab_size, HIDDEN), jnp.float32),
        # stand-in BERT pooler dense — stored in bf16 (halves weight HBM traffic)
        "pooler_w": (0.02 * jax.random.normal(k_pw, (HIDDEN, HIDDEN), jnp.float32)
                     ).astype(jnp.bfloat16),
        "pooler_b": jnp.zeros((1, HIDDEN), jnp.float32),
        # classifier head: exactly mirrors the PyTorch init (kept in f32)
        "classifier_w": classifier_w,
        "classifier_b": classifier_b,
        # kernel-layout copies: lane-dense 128-wide pad done ONCE at init,
        # weight in bf16 so the classifier matmul runs at native MXU rate
        "classifier_w_padded": jnp.pad(
            classifier_w, ((0, 0), (0, PAD_LABELS - NUM_LABELS))).astype(jnp.bfloat16),
        "classifier_b_padded": jnp.pad(
            classifier_b, ((0, 0), (0, PAD_LABELS - NUM_LABELS))),
    }
    return params


if __name__ == "__main__":
    key = jax.random.PRNGKey(0)
    k_params, k_ids = jax.random.split(key)

    batch, seq, vocab = 2, 8, 32
    params = init_params(k_params, vocab)
    input_ids = jax.random.randint(k_ids, (batch, seq), 0, vocab, dtype=jnp.int32)
    labels = jnp.zeros((batch,), jnp.int32)   # unused by forward, kept for parity

    fwd = jax.jit(bert_classifier_forward)
    logits = fwd(input_ids, params, labels)
    jax.block_until_ready(logits)

    # sanity check against a plain-JAX reference with identical dtype handling
    h_bf = jnp.take(params["embedding"], input_ids[:, 0], axis=0).astype(jnp.bfloat16)
    acc = (jnp.dot(h_bf, params["pooler_w"], preferred_element_type=jnp.float32)
           + params["pooler_b"])
    pooled_ref = jnp.tanh(acc.astype(jnp.bfloat16))
    ref_full = (jnp.dot(pooled_ref, params["classifier_w_padded"],
                        preferred_element_type=jnp.float32)
                + params["classifier_b_padded"])
    ref = ref_full[:, :NUM_LABELS].astype(jnp.bfloat16).astype(jnp.float32)

    assert logits.shape == (batch, NUM_LABELS)
    assert logits.dtype == jnp.float32
    assert jnp.allclose(logits, ref, atol=2e-2, rtol=2e-2), (logits, ref)

    print("KERNEL_OK")
</pallas_src>

<mosaic_0001>
module attributes {stable_mosaic.version = 11 : i64} {
  func.func @_bert_head_kernel(%arg0: i32, %arg1: memref<16xi32, #tpu.memory_space<smem>>, %arg2: memref<32x768xf32, #tpu.memory_space<any>>, %arg3: memref<768x768xbf16, #tpu.memory_space<vmem>>, %arg4: memref<1x768xf32, #tpu.memory_space<vmem>>, %arg5: memref<768x128xbf16, #tpu.memory_space<vmem>>, %arg6: memref<1x128xf32, #tpu.memory_space<vmem>>, %arg7: memref<16x128xbf16, #tpu.memory_space<vmem>>, %arg8: memref<16x768xf32, #tpu.memory_space<vmem>>, %arg9: memref<!tpu.dma_semaphore, #tpu.memory_space<semaphore_mem>>) attributes {dimension_semantics = [#tpu.dimension_semantics<parallel>], iteration_bounds = array<i64: 1>, scalar_prefetch = 1 : i64, scratch_operands = 2 : i64, tpu.core_type = #tpu.core_type<tc>, window_params = [{}, {pipeline_mode = #tpu.pipeline_mode<synchronous>, transform_indices = @transform_1, window_bounds = array<i64: 768, 768>}, {pipeline_mode = #tpu.pipeline_mode<synchronous>, transform_indices = @transform_2, window_bounds = array<i64: 1, 768>}, {pipeline_mode = #tpu.pipeline_mode<synchronous>, transform_indices = @transform_3, window_bounds = array<i64: 768, 128>}, {pipeline_mode = #tpu.pipeline_mode<synchronous>, transform_indices = @transform_4, window_bounds = array<i64: 1, 128>}, {transform_indices = @transform_5, window_bounds = array<i64: 16, 128>}]} {
    %c16_i32 = arith.constant 16 : i32
    %0 = arith.muli %arg0, %c16_i32 : i32
    %c0_i32 = arith.constant 0 : i32
    %c16_i32_0 = arith.constant 16 : i32
    %1 = arith.addi %c0_i32, %c16_i32_0 : i32
    %c1_i32 = arith.constant 1 : i32
    scf.for %arg10 = %c0_i32 to %1 step %c1_i32  : i32 {
      %c1_i32_17 = arith.constant 1 : i32
      %19 = arith.muli %arg10, %c1_i32_17 : i32
      %c0_i32_18 = arith.constant 0 : i32
      %20 = arith.addi %c0_i32_18, %19 : i32
      %21 = arith.addi %0, %20 : i32
      %22 = arith.index_cast %21 : i32 to index
      %23 = memref.load %arg1[%22] : memref<16xi32, #tpu.memory_space<smem>>
      %c0_i32_19 = arith.constant 0 : i32
      %24 = tpu.memref_slice %arg2[%23, %c0_i32_19] : memref<32x768xf32, #tpu.memory_space<any>> -> memref<1x768xf32, #tpu.memory_space<any>>
      %c0_i32_20 = arith.constant 0 : i32
      %25 = tpu.memref_slice %arg8[%20, %c0_i32_20] : memref<16x768xf32, #tpu.memory_space<vmem>> -> memref<1x768xf32, #tpu.memory_space<vmem>>
      tpu.enqueue_dma source(%24 : memref<1x768xf32, #tpu.memory_space<any>>) target(%25 : memref<1x768xf32, #tpu.memory_space<vmem>>) target_semaphore(%arg9 : memref<!tpu.dma_semaphore, #tpu.memory_space<semaphore_mem>>)
    }
    %c16_i32_1 = arith.constant 16 : i32
    %c0_i32_2 = arith.constant 0 : i32
    %c16_i32_3 = arith.constant 16 : i32
    %2 = arith.addi %c0_i32_2, %c16_i32_3 : i32
    %c1_i32_4 = arith.constant 1 : i32
    scf.for %arg10 = %c0_i32_2 to %2 step %c1_i32_4  : i32 {
      %c0_i32_17 = arith.constant 0 : i32
      %c0_i32_18 = arith.constant 0 : i32
      %19 = tpu.memref_slice %arg2[%c0_i32_17, %c0_i32_18] : memref<32x768xf32, #tpu.memory_space<any>> -> memref<1x768xf32, #tpu.memory_space<any>>
      %c0_i32_19 = arith.constant 0 : i32
      %c0_i32_20 = arith.constant 0 : i32
      %20 = tpu.memref_slice %arg8[%c0_i32_19, %c0_i32_20] : memref<16x768xf32, #tpu.memory_space<vmem>> -> memref<1x768xf32, #tpu.memory_space<vmem>>
      tpu.wait_dma2 semaphore(%arg9 : memref<!tpu.dma_semaphore, #tpu.memory_space<semaphore_mem>>) src(%19 : memref<1x768xf32, #tpu.memory_space<any>>) dst(%20 : memref<1x768xf32, #tpu.memory_space<vmem>>)
    }
    %c0 = arith.constant 0 : index
    %c0_5 = arith.constant 0 : index
    %3 = vector.load %arg8[%c0, %c0_5] : memref<16x768xf32, #tpu.memory_space<vmem>>, vector<16x768xf32>
    %4 = arith.truncf %3 : vector<16x768xf32> to vector<16x768xbf16>
    %c0_6 = arith.constant 0 : index
    %c0_7 = arith.constant 0 : index
    %5 = vector.load %arg3[%c0_6, %c0_7] : memref<768x768xbf16, #tpu.memory_space<vmem>>, vector<768x768xbf16>
    %cst = arith.constant dense<0.000000e+00> : vector<16x768xf32>
    %6 = tpu.matmul %4, %5, %cst {dimension_numbers = #tpu.dot_dimension_numbers<[1], [0], [0], [1], [0, 0, 1, 1], [], []>} : vector<16x768xbf16>, vector<768x768xbf16>, vector<16x768xf32> -> vector<16x768xf32>
    %c0_8 = arith.constant 0 : index
    %c0_9 = arith.constant 0 : index
    %7 = vector.load %arg4[%c0_8, %c0_9] : memref<1x768xf32, #tpu.memory_space<vmem>>, vector<1x768xf32>
    %8 = vector.broadcast %7 : vector<1x768xf32> to vector<16x768xf32>
    %9 = arith.addf %6, %8 : vector<16x768xf32>
    %10 = arith.truncf %9 : vector<16x768xf32> to vector<16x768xbf16>
    %11 = math.tanh %10 : vector<16x768xbf16>
    %c0_10 = arith.constant 0 : index
    %c0_11 = arith.constant 0 : index
    %12 = vector.load %arg5[%c0_10, %c0_11] : memref<768x128xbf16, #tpu.memory_space<vmem>>, vector<768x128xbf16>
    %cst_12 = arith.constant dense<0.000000e+00> : vector<16x128xf32>
    %13 = tpu.matmul %11, %12, %cst_12 {dimension_numbers = #tpu.dot_dimension_numbers<[1], [0], [0], [1], [0, 0, 1, 1], [], []>} : vector<16x768xbf16>, vector<768x128xbf16>, vector<16x128xf32> -> vector<16x128xf32>
    %c0_13 = arith.constant 0 : index
    %c0_14 = arith.constant 0 : index
    %14 = vector.load %arg6[%c0_13, %c0_14] : memref<1x128xf32, #tpu.memory_space<vmem>>, vector<1x128xf32>
    %15 = vector.broadcast %14 : vector<1x128xf32> to vector<16x128xf32>
    %16 = arith.addf %13, %15 : vector<16x128xf32>
    %17 = arith.truncf %16 : vector<16x128xf32> to vector<16x128xbf16>
    %c0_15 = arith.constant 0 : index
    %c0_16 = arith.constant 0 : index
    %18 = vector.load %arg7[%c0_15, %c0_16] : memref<16x128xbf16, #tpu.memory_space<vmem>>, vector<16x128xbf16>
    tpu.vector_store %arg7[%c0_15, %c0_16], %17 {strides = array<i32>} : memref<16x128xbf16, #tpu.memory_space<vmem>>, vector<16x128xbf16>,
    return
  }
  func.func @transform_1(%arg0: i32, %arg1: memref<16xi32, #tpu.memory_space<smem>>) -> (i32, i32) {
    %c0_i32 = arith.constant 0 : i32
    %c0_i32_0 = arith.constant 0 : i32
    %c0_i32_1 = arith.constant 0 : i32
    return %c0_i32, %c0_i32_0 : i32, i32
  }
  func.func @transform_2(%arg0: i32, %arg1: memref<16xi32, #tpu.memory_space<smem>>) -> (i32, i32) {
    %c0_i32 = arith.constant 0 : i32
    %c0_i32_0 = arith.constant 0 : i32
    %c0_i32_1 = arith.constant 0 : i32
    return %c0_i32, %c0_i32_0 : i32, i32
  }
  func.func @transform_3(%arg0: i32, %arg1: memref<16xi32, #tpu.memory_space<smem>>) -> (i32, i32) {
    %c0_i32 = arith.constant 0 : i32
    %c0_i32_0 = arith.constant 0 : i32
    %c0_i32_1 = arith.constant 0 : i32
    return %c0_i32, %c0_i32_0 : i32, i32
  }
  func.func @transform_4(%arg0: i32, %arg1: memref<16xi32, #tpu.memory_space<smem>>) -> (i32, i32) {
    %c0_i32 = arith.constant 0 : i32
    %c0_i32_0 = arith.constant 0 : i32
    %c0_i32_1 = arith.constant 0 : i32
    return %c0_i32, %c0_i32_0 : i32, i32
  }
  func.func @transform_5(%arg0: i32, %arg1: memref<16xi32, #tpu.memory_space<smem>>) -> (i32, i32) {
    %c0_i32 = arith.constant 0 : i32
    %c0_i32_0 = arith.constant 0 : i32
    return %arg0, %c0_i32 : i32, i32
  }
}

</mosaic_0001>

<llo_original>
// kernel: bert_classifier_forward.1
$region0: #{bert_classifier_forward.1}
  #allocation0 [shape = 'u32[]', space=smem, size = 0x4, offset = 0x4, fixed_abs, tag = 'smem constant byte address 0x4 - core index']
  #allocation1 [shape = 'u32[72,128]{1,0:T(1,128)}', space=vmem, size = 0x9000, scoped, tag = 'internal scratch']
  #allocation2 [shape = 'f32[16,768]{1,0:T(8,128)}', space=vmem, size = 0xc000, scoped, tag = 'scratch operand']
  #allocation3 [shape = 's32[1]{0}', space=sflag, size = 0x4, scoped, tag = 'scratch operand']
  #allocation4 [shape = 's32[1]{0}', space=sflag, size = 0x4, scoped, tag = 'scoped memory for bert_classifier_forward.1']
  #allocation5 [shape = 'u8[512]{0}', space=smem, size = 0x200, scoped, tag = 'prefetched SMEM operand 0']
  #allocation13 [shape = 's32[]', space=sflag, size = 0x4, offset = 0, fixed_abs, tag = 'sflag constant byte address 0x0 - dummy sync flag']
  %s0 = inlined_call_operand.vmem [shape: s32[16], index: 0, kind: input, shape index: {}]
  %s1 = inlined_call_operand.hbm [shape: f32[32,768], index: 1, kind: input, shape index: {}]
  %s2 = inlined_call_operand.hbm [shape: bf16[768,768], index: 2, kind: input, shape index: {}]
  %s3 = inlined_call_operand.hbm [shape: f32[1,768], index: 3, kind: input, shape index: {}]
  %s4 = inlined_call_operand.hbm [shape: bf16[768,128], index: 4, kind: input, shape index: {}]
  %s5 = inlined_call_operand.hbm [shape: f32[1,128], index: 5, kind: input, shape index: {}]
  %s6 = inlined_call_operand.vmem [shape: bf16[16,128], index: 6, kind: output, shape index: {}]
  %s7 = sld [smem:[#allocation0]]
  $region56: #{bert_classifier_forward.1} parent=0
    _
  %s9 = ssub.s32 1, %s7
  %s10 = scalar_select 0, %s9, %s7
  %s12 = sshll.u32 %s0, 4
  %s13 = int_to_ptr.vmem [resolvable:$true] %s12
  %15 = dma.vmem_to_smem %s13, 16, [#allocation5], [#allocation4]
  %17 = dma.done [#allocation4], 16
  %18 = sfence
  $region1: #{bert_classifier_forward.1} parent=0
    #allocation6 [shape = 'u8[1179648]{0}', space=vmem, size = 0x120000, scoped, tag = 'input window, operand 2, single buffered']
    #allocation7 [shape = 's32[1]{0}', space=sflag, size = 0x4, scoped, tag = 'scoped memory for bert_classifier_forward.1']
    #allocation8 [shape = 'u8[3072]{0}', space=vmem, size = 0xc00, scoped, tag = 'input window, operand 3, single buffered']
    #allocation9 [shape = 's32[1]{0}', space=sflag, size = 0x4, scoped, tag = 'scoped memory for bert_classifier_forward.1']
    #allocation10 [shape = 'u8[196608]{0}', space=vmem, size = 0x30000, scoped, tag = 'input window, operand 4, single buffered']
    #allocation11 [shape = 'u8[512]{0}', space=vmem, size = 0x400, scoped, tag = 'input window, operand 5, single buffered']
    #allocation12 [shape = 's32[1]{0}', space=sflag, size = 0x4, scoped, tag = 'scoped memory for bert_classifier_forward.1']
    %19 = vsyncpa [#allocation7], 0
    %20 = vsyncpa [#allocation9], 0
    %21 = vsyncpa [#allocation12], 0
    // Predicated region
    $region2: #{bert_classifier_forward.1} parent=1 // pred_check
      _
    $region3: #{bert_classifier_forward.1} parent=1 // pred_check_branch
      %23 = sbr.rel (0) target = $region5
    $region4: #{bert_classifier_forward.1} parent=1 // pred_region
      %25 = vsyncadd [#allocation7], 0
      %s26 = sshll.u32 %s2, 4
      %s27 = int_to_ptr.hbm [resolvable:$true] %s26
      %s28 = sshll.u32 [#allocation6], 4
      %s29 = int_to_ptr.vmem [resolvable:$true] %s28
      %34 = dma.hbm_to_vmem [thread:$0]  %s27, 36864, %s29, [#allocation7], 384, 384, 24
    $region5: #{bert_classifier_forward.1} parent=1 // pred_fallthru
      _
    // Predicated region
    $region6: #{bert_classifier_forward.1} parent=1 // pred_check
      _
    $region7: #{bert_classifier_forward.1} parent=1 // pred_check_branch
      %36 = sbr.rel (0) target = $region9
    $region8: #{bert_classifier_forward.1} parent=1 // pred_region
      %38 = vsyncadd [#allocation9], 0
      %s40 = sshll.u32 %s3, 4
      %s41 = int_to_ptr.hbm [resolvable:$true] %s40
      %s42 = sshll.u32 [#allocation8], 4
      %s43 = int_to_ptr.vmem [resolvable:$true] %s42
      %45 = dma.hbm_to_vmem [thread:$0]  %s41, 96, %s43, [#allocation9]
    $region9: #{bert_classifier_forward.1} parent=1 // pred_fallthru
      _
    // Predicated region
    $region10: #{bert_classifier_forward.1} parent=1 // pred_check
      _
    $region11: #{bert_classifier_forward.1} parent=1 // pred_check_branch
      %47 = sbr.rel (0) target = $region13
    $region12: #{bert_classifier_forward.1} parent=1 // pred_region
      %49 = vsyncadd [#allocation9], 0
      %s50 = sshll.u32 %s4, 4
      %s51 = int_to_ptr.hbm [resolvable:$true] %s50
      %s52 = sshll.u32 [#allocation10], 4
      %s53 = int_to_ptr.vmem [resolvable:$true] %s52
      %58 = dma.hbm_to_vmem [thread:$0]  %s51, 6144, %s53, [#allocation9], 64, 64, 4
    $region13: #{bert_classifier_forward.1} parent=1 // pred_fallthru
      _
    // Predicated region
    $region14: #{bert_classifier_forward.1} parent=1 // pred_check
      _
    $region15: #{bert_classifier_forward.1} parent=1 // pred_check_branch
      %60 = sbr.rel (0) target = $region17
    $region16: #{bert_classifier_forward.1} parent=1 // pred_region
      %62 = vsyncadd [#allocation12], 0
      %s64 = sshll.u32 %s5, 4
      %s65 = int_to_ptr.hbm [resolvable:$true] %s64
      %s66 = sshll.u32 [#allocation11], 4
      %s67 = int_to_ptr.vmem [resolvable:$true] %s66
      %69 = dma.hbm_to_vmem [thread:$0]  %s65, 16, %s67, [#allocation12]
    $region17: #{bert_classifier_forward.1} parent=1 // pred_fallthru
      _
    // Predicated region
    $region18: #{bert_classifier_forward.1} parent=1 // pred_check
      _
    $region19: #{bert_classifier_forward.1} parent=1 // pred_check_branch
      %71 = sbr.rel (0) target = $region21
    $region20: #{bert_classifier_forward.1} parent=1 // pred_region
      %73 = dma.done [#allocation7], 36864
    $region21: #{bert_classifier_forward.1} parent=1 // pred_fallthru
      _
    // Predicated region
    $region22: #{bert_classifier_forward.1} parent=1 // pred_check
      _
    $region23: #{bert_classifier_forward.1} parent=1 // pred_check_branch
      %75 = sbr.rel (0) target = $region25
    $region24: #{bert_classifier_forward.1} parent=1 // pred_region
      %77 = dma.done [#allocation9], 96
    $region25: #{bert_classifier_forward.1} parent=1 // pred_fallthru
      _
    // Predicated region
    $region26: #{bert_classifier_forward.1} parent=1 // pred_check
      _
    $region27: #{bert_classifier_forward.1} parent=1 // pred_check_branch
      %79 = sbr.rel (0) target = $region29
    $region28: #{bert_classifier_forward.1} parent=1 // pred_region
      %81 = dma.done [#allocation9], 6144
    $region29: #{bert_classifier_forward.1} parent=1 // pred_fallthru
      _
    // Predicated region
    $region30: #{bert_classifier_forward.1} parent=1 // pred_check
      _
    $region31: #{bert_classifier_forward.1} parent=1 // pred_check_branch
      %83 = sbr.rel (0) target = $region33
    $region32: #{bert_classifier_forward.1} parent=1 // pred_region
      %85 = dma.done [#allocation12], 16
    $region33: #{bert_classifier_forward.1} parent=1 // pred_fallthru
      _
    %s86 = smul.u32 0, 16
    loop: start=0, step=1, limit=16
    $region34: #{bert_classifier_forward.1} parent=1 // loop_pre_header
      _
    $region35: #{bert_classifier_forward.1} parent=1 // loop_header
      %s88 = sphi 0, %s92
      %p89 = scmp.ge.s32.totalorder %s88, 16
    $region36: #{bert_classifier_forward.1} parent=1 // loop_header_branch
      %91 = sbr.rel (%p89) target = $region40
    $region37: #{bert_classifier_forward.1} parent=1 // loop_body
      %s93 = sadd.s32 %s86, %s88
      %s94 = sld [smem:[#allocation5 + %s93]]
      %s95 = sshrl.u32 %s94, 3
      %s96 = sand.u32 %s94, 7
      %s97 = smul.u32 %s95, 48
      %s98 = sadd.s32 %s96, %s97
      %s99 = scalar_lea.hbm %s1, %s98
      %s100 = sshrl.u32 %s88, 3
      %s101 = sand.u32 %s88, 7
      %s102 = smul.u32 %s100, 48
      %s103 = sadd.s32 %s101, %s102
      %s104 = scalar_lea.vmem [#allocation2], %s103
      %s105 = sshll.u32 %s99, 4
      %s106 = int_to_ptr.hbm [resolvable:$true] %s105
      %s107 = sshll.u32 %s104, 4
      %s108 = int_to_ptr.vmem [resolvable:$true] %s107
      %112 = dma.hbm_to_vmem [thread:$0]  %s106, 96, %s108, [#allocation3], 128, 128, 1
    $region38: #{bert_classifier_forward.1} parent=1 // loop_footer
      %s92 = sadd.s32 1, %s88
    $region39: #{bert_classifier_forward.1} parent=1 // loop_footer_branch
      %87 = sbr.rel target = $region35
    $region40: #{bert_classifier_forward.1} parent=1 // loop_exit
      _
    loop: start=0, step=1, limit=16
    $region41: #{bert_classifier_forward.1} parent=1 // loop_pre_header
      _
    $region42: #{bert_classifier_forward.1} parent=1 // loop_header
      %s114 = sphi 0, %s118
      %p115 = scmp.ge.s32.totalorder %s114, 16
    $region43: #{bert_classifier_forward.1} parent=1 // loop_header_branch
      %117 = sbr.rel (%p115) target = $region47
    $region44: #{bert_classifier_forward.1} parent=1 // loop_body
      %s119 = smul.u32 1, 6
      %s120 = sshll.u32 %s119, 4
      %121 = dma.done [#allocation3], %s120
    $region45: #{bert_classifier_forward.1} parent=1 // loop_footer
      %s118 = sadd.s32 1, %s114
    $region46: #{bert_classifier_forward.1} parent=1 // loop_footer_branch
      %113 = sbr.rel target = $region42
    $region47: #{bert_classifier_forward.1} parent=1 // loop_exit
      _
    %v122 = vld [vmem:[#allocation2] sm:$0xff]
    %v123 = vld [vmem:[#allocation2 + $0x8] sm:$0xff]
    %v124 = vld [vmem:[#allocation2 + $0x10] sm:$0xff]
    %v125 = vld [vmem:[#allocation2 + $0x18] sm:$0xff]
    %v126 = vld [vmem:[#allocation2 + $0x20] sm:$0xff]
    %v127 = vld [vmem:[#allocation2 + $0x28] sm:$0xff]
    %v128 = vld [vmem:[#allocation2 + $0x30] sm:$0xff]
    %v129 = vld [vmem:[#allocation2 + $0x38] sm:$0xff]
    %v130 = vld [vmem:[#allocation2 + $0x40] sm:$0xff]
    %v131 = vld [vmem:[#allocation2 + $0x48] sm:$0xff]
    %v132 = vld [vmem:[#allocation2 + $0x50] sm:$0xff]
    %v133 = vld [vmem:[#allocation2 + $0x58] sm:$0xff]
    %v134 = vpack.c.bf16 %v128, %v122
    %v135 = vpack.c.bf16 %v129, %v123
    %v136 = vpack.c.bf16 %v130, %v124
    %v137 = vpack.c.bf16 %v131, %v125
    %v138 = vpack.c.bf16 %v132, %v126
    %v139 = vpack.c.bf16 %v133, %v127
    %v140 = vld [vmem:[#allocation6] sm:$0xff]
    %v141 = vld [vmem:[#allocation6 + $0x8] sm:$0xff]
    %v142 = vld [vmem:[#allocation6 + $0x10] sm:$0xff]
    %v143 = vld [vmem:[#allocation6 + $0x18] sm:$0xff]
    %v144 = vld [vmem:[#allocation6 + $0x20] sm:$0xff]
    %v145 = vld [vmem:[#allocation6 + $0x28] sm:$0xff]
    %v146 = vld [vmem:[#allocation6 + $0x30] sm:$0xff]
    %v147 = vld [vmem:[#allocation6 + $0x38] sm:$0xff]
    %v148 = vld [vmem:[#allocation6 + $0x40] sm:$0xff]
    %v149 = vld [vmem:[#allocation6 + $0x48] sm:$0xff]
    %v150 = vld [vmem:[#allocation6 + $0x50] sm:$0xff]
    %v151 = vld [vmem:[#allocation6 + $0x58] sm:$0xff]
    %v152 = vld [vmem:[#allocation6 + $0x60] sm:$0xff]
    %v153 = vld [vmem:[#allocation6 + $0x68] sm:$0xff]
    %v154 = vld [vmem:[#allocation6 + $0x70] sm:$0xff]
    %v155 = vld [vmem:[#allocation6 + $0x78] sm:$0xff]
    %v156 = vld [vmem:[#allocation6 + $0x80] sm:$0xff]
    %v157 = vld [vmem:[#allocation6 + $0x88] sm:$0xff]
    %v158 = vld [vmem:[#allocation6 + $0x90] sm:$0xff]
    %v159 = vld [vmem:[#allocation6 + $0x98] sm:$0xff]
    %v160 = vld [vmem:[#allocation6 + $0xa0] sm:$0xff]
    %v161 = vld [vmem:[#allocation6 + $0xa8] sm:$0xff]
    %v162 = vld [vmem:[#allocation6 + $0xb0] sm:$0xff]
    %v163 = vld [vmem:[#allocation6 + $0xb8] sm:$0xff]
    %v164 = vld [vmem:[#allocation6 + $0xc0] sm:$0xff]
    %v165 = vld [vmem:[#allocation6 + $0xc8] sm:$0xff]
    %v166 = vld [vmem:[#allocation6 + $0xd0] sm:$0xff]
    %v167 = vld [vmem:[#allocation6 + $0xd8] sm:$0xff]
    %v168 = vld [vmem:[#allocation6 + $0xe0] sm:$0xff]
    %v169 = vld [vmem:[#allocation6 + $0xe8] sm:$0xff]
    %v170 = vld [vmem:[#allocation6 + $0xf0] sm:$0xff]
    %v171 = vld [vmem:[#allocation6 + $0xf8] sm:$0xff]
    %v172 = vld [vmem:[#allocation6 + $0x100] sm:$0xff]
    %v173 = vld [vmem:[#allocation6 + $0x108] sm:$0xff]
    %v174 = vld [vmem:[#allocation6 + $0x110] sm:$0xff]
    %v175 = vld [vmem:[#allocation6 + $0x118] sm:$0xff]
    %v176 = vld [vmem:[#allocation6 + $0x120] sm:$0xff]
    %v177 = vld [vmem:[#allocation6 + $0x128] sm:$0xff]
    %v178 = vld [vmem:[#allocation6 + $0x130] sm:$0xff]
    %v179 = vld [vmem:[#allocation6 + $0x138] sm:$0xff]
    %v180 = vld [vmem:[#allocation6 + $0x140] sm:$0xff]
    %v181 = vld [vmem:[#allocation6 + $0x148] sm:$0xff]
    %v182 = vld [vmem:[#allocation6 + $0x150] sm:$0xff]
    %v183 = vld [vmem:[#allocation6 + $0x158] sm:$0xff]
    %v184 = vld [vmem:[#allocation6 + $0x160] sm:$0xff]
    %v185 = vld [vmem:[#allocation6 + $0x168] sm:$0xff]
    %v186 = vld [vmem:[#allocation6 + $0x170] sm:$0xff]
    %v187 = vld [vmem:[#allocation6 + $0x178] sm:$0xff]
    %v188 = vld [vmem:[#allocation6 + $0x180] sm:$0xff]
    %v189 = vld [vmem:[#allocation6 + $0x188] sm:$0xff]
    %v190 = vld [vmem:[#allocation6 + $0x190] sm:$0xff]
    %v191 = vld [vmem:[#allocation6 + $0x198] sm:$0xff]
    %v192 = vld [vmem:[#allocation6 + $0x1a0] sm:$0xff]
    %v193 = vld [vmem:[#allocation6 + $0x1a8] sm:$0xff]
    %v194 = vld [vmem:[#allocation6 + $0x1b0] sm:$0xff]
    %v195 = vld [vmem:[#allocation6 + $0x1b8] sm:$0xff]
    %v196 = vld [vmem:[#allocation6 + $0x1c0] sm:$0xff]
    %v197 = vld [vmem:[#allocation6 + $0x1c8] sm:$0xff]
    %v198 = vld [vmem:[#allocation6 + $0x1d0] sm:$0xff]
    %v199 = vld [vmem:[#allocation6 + $0x1d8] sm:$0xff]
    %v200 = vld [vmem:[#allocation6 + $0x1e0] sm:$0xff]
    %v201 = vld [vmem:[#allocation6 + $0x1e8] sm:$0xff]
    %v202 = vld [vmem:[#allocation6 + $0x1f0] sm:$0xff]
    %v203 = vld [vmem:[#allocation6 + $0x1f8] sm:$0xff]
    %v204 = vld [vmem:[#allocation6 + $0x200] sm:$0xff]
    %v205 = vld [vmem:[#allocation6 + $0x208] sm:$0xff]
    %v206 = vld [vmem:[#allocation6 + $0x210] sm:$0xff]
    %v207 = vld [vmem:[#allocation6 + $0x218] sm:$0xff]
    %v208 = vld [vmem:[#allocation6 + $0x220] sm:$0xff]
    %v209 = vld [vmem:[#allocation6 + $0x228] sm:$0xff]
    %v210 = vld [vmem:[#allocation6 + $0x230] sm:$0xff]
    %v211 = vld [vmem:[#allocation6 + $0x238] sm:$0xff]
    %v212 = vld [vmem:[#allocation6 + $0x240] sm:$0xff]
    %v213 = vld [vmem:[#allocation6 + $0x248] sm:$0xff]
    %v214 = vld [vmem:[#allocation6 + $0x250] sm:$0xff]
    %v215 = vld [vmem:[#allocation6 + $0x258] sm:$0xff]
    %v216 = vld [vmem:[#allocation6 + $0x260] sm:$0xff]
    %v217 = vld [vmem:[#allocation6 + $0x268] sm:$0xff]
    %v218 = vld [vmem:[#allocation6 + $0x270] sm:$0xff]
    %v219 = vld [vmem:[#allocation6 + $0x278] sm:$0xff]
    %v220 = vld [vmem:[#allocation6 + $0x280] sm:$0xff]
    %v221 = vld [vmem:[#allocation6 + $0x288] sm:$0xff]
    %v222 = vld [vmem:[#allocation6 + $0x290] sm:$0xff]
    %v223 = vld [vmem:[#allocation6 + $0x298] sm:$0xff]
    %v224 = vld [vmem:[#allocation6 + $0x2a0] sm:$0xff]
    %v225 = vld [vmem:[#allocation6 + $0x2a8] sm:$0xff]
    %v226 = vld [vmem:[#allocation6 + $0x2b0] sm:$0xff]
    %v227 = vld [vmem:[#allocation6 + $0x2b8] sm:$0xff]
    %v228 = vld [vmem:[#allocation6 + $0x2c0] sm:$0xff]
    %v229 = vld [vmem:[#allocation6 + $0x2c8] sm:$0xff]
    %v230 = vld [vmem:[#allocation6 + $0x2d0] sm:$0xff]
    %v231 = vld [vmem:[#allocation6 + $0x2d8] sm:$0xff]
    %v232 = vld [vmem:[#allocation6 + $0x2e0] sm:$0xff]
    %v233 = vld [vmem:[#allocation6 + $0x2e8] sm:$0xff]
    %v234 = vld [vmem:[#allocation6 + $0x2f0] sm:$0xff]
    %v235 = vld [vmem:[#allocation6 + $0x2f8] sm:$0xff]
    %v236 = vld [vmem:[#allocation6 + $0x300] sm:$0xff]
    %v237 = vld [vmem:[#allocation6 + $0x308] sm:$0xff]
    %v238 = vld [vmem:[#allocation6 + $0x310] sm:$0xff]
    %v239 = vld [vmem:[#allocation6 + $0x318] sm:$0xff]
    %v240 = vld [vmem:[#allocation6 + $0x320] sm:$0xff]
    %v241 = vld [vmem:[#allocation6 + $0x328] sm:$0xff]
    %v242 = vld [vmem:[#allocation6 + $0x330] sm:$0xff]
    %v243 = vld [vmem:[#allocation6 + $0x338] sm:$0xff]
    %v244 = vld [vmem:[#allocation6 + $0x340] sm:$0xff]
    %v245 = vld [vmem:[#allocation6 + $0x348] sm:$0xff]
    %v246 = vld [vmem:[#allocation6 + $0x350] sm:$0xff]
    %v247 = vld [vmem:[#allocation6 + $0x358] sm:$0xff]
    %v248 = vld [vmem:[#allocation6 + $0x360] sm:$0xff]
    %v249 = vld [vmem:[#allocation6 + $0x368] sm:$0xff]
    %v250 = vld [vmem:[#allocation6 + $0x370] sm:$0xff]
    %v251 = vld [vmem:[#allocation6 + $0x378] sm:$0xff]
    %v252 = vld [vmem:[#allocation6 + $0x380] sm:$0xff]
    %v253 = vld [vmem:[#allocation6 + $0x388] sm:$0xff]
    %v254 = vld [vmem:[#allocation6 + $0x390] sm:$0xff]
    %v255 = vld [vmem:[#allocation6 + $0x398] sm:$0xff]
    %v256 = vld [vmem:[#allocation6 + $0x3a0] sm:$0xff]
    %v257 = vld [vmem:[#allocation6 + $0x3a8] sm:$0xff]
    %v258 = vld [vmem:[#allocation6 + $0x3b0] sm:$0xff]
    %v259 = vld [vmem:[#allocation6 + $0x3b8] sm:$0xff]
    %v260 = vld [vmem:[#allocation6 + $0x3c0] sm:$0xff]
    %v261 = vld [vmem:[#allocation6 + $0x3c8] sm:$0xff]
    %v262 = vld [vmem:[#allocation6 + $0x3d0] sm:$0xff]
    %v263 = vld [vmem:[#allocation6 + $0x3d8] sm:$0xff]
    %v264 = vld [vmem:[#allocation6 + $0x3e0] sm:$0xff]
    %v265 = vld [vmem:[#allocation6 + $0x3e8] sm:$0xff]
    %v266 = vld [vmem:[#allocation6 + $0x3f0] sm:$0xff]
    %v267 = vld [vmem:[#allocation6 + $0x3f8] sm:$0xff]
    %v268 = vld [vmem:[#allocation6 + $0x400] sm:$0xff]
    %v269 = vld [vmem:[#allocation6 + $0x408] sm:$0xff]
    %v270 = vld [vmem:[#allocation6 + $0x410] sm:$0xff]
    %v271 = vld [vmem:[#allocation6 + $0x418] sm:$0xff]
    %v272 = vld [vmem:[#allocation6 + $0x420] sm:$0xff]
    %v273 = vld [vmem:[#allocation6 + $0x428] sm:$0xff]
    %v274 = vld [vmem:[#allocation6 + $0x430] sm:$0xff]
    %v275 = vld [vmem:[#allocation6 + $0x438] sm:$0xff]
    %v276 = vld [vmem:[#allocation6 + $0x440] sm:$0xff]
    %v277 = vld [vmem:[#allocation6 + $0x448] sm:$0xff]
    %v278 = vld [vmem:[#allocation6 + $0x450] sm:$0xff]
    %v279 = vld [vmem:[#allocation6 + $0x458] sm:$0xff]
    %v280 = vld [vmem:[#allocation6 + $0x460] sm:$0xff]
    %v281 = vld [vmem:[#allocation6 + $0x468] sm:$0xff]
    %v282 = vld [vmem:[#allocation6 + $0x470] sm:$0xff]
    %v283 = vld [vmem:[#allocation6 + $0x478] sm:$0xff]
    %v284 = vld [vmem:[#allocation6 + $0x480] sm:$0xff]
    %v285 = vld [vmem:[#allocation6 + $0x488] sm:$0xff]
    %v286 = vld [vmem:[#allocation6 + $0x490] sm:$0xff]
    %v287 = vld [vmem:[#allocation6 + $0x498] sm:$0xff]
    %v288 = vld [vmem:[#allocation6 + $0x4a0] sm:$0xff]
    %v289 = vld [vmem:[#allocation6 + $0x4a8] sm:$0xff]
    %v290 = vld [vmem:[#allocation6 + $0x4b0] sm:$0xff]
    %v291 = vld [vmem:[#allocation6 + $0x4b8] sm:$0xff]
    %v292 = vld [vmem:[#allocation6 + $0x4c0] sm:$0xff]
    %v293 = vld [vmem:[#allocation6 + $0x4c8] sm:$0xff]
    %v294 = vld [vmem:[#allocation6 + $0x4d0] sm:$0xff]
    %v295 = vld [vmem:[#allocation6 + $0x4d8] sm:$0xff]
    %v296 = vld [vmem:[#allocation6 + $0x4e0] sm:$0xff]
    %v297 = vld [vmem:[#allocation6 + $0x4e8] sm:$0xff]
    %v298 = vld [vmem:[#allocation6 + $0x4f0] sm:$0xff]
    %v299 = vld [vmem:[#allocation6 + $0x4f8] sm:$0xff]
    %v300 = vld [vmem:[#allocation6 + $0x500] sm:$0xff]
    %v301 = vld [vmem:[#allocation6 + $0x508] sm:$0xff]
    %v302 = vld [vmem:[#allocation6 + $0x510] sm:$0xff]
    %v303 = vld [vmem:[#allocation6 + $0x518] sm:$0xff]
    %v304 = vld [vmem:[#allocation6 + $0x520] sm:$0xff]
    %v305 = vld [vmem:[#allocation6 + $0x528] sm:$0xff]
    %v306 = vld [vmem:[#allocation6 + $0x530] sm:$0xff]
    %v307 = vld [vmem:[#allocation6 + $0x538] sm:$0xff]
    %v308 = vld [vmem:[#allocation6 + $0x540] sm:$0xff]
    %v309 = vld [vmem:[#allocation6 + $0x548] sm:$0xff]
    %v310 = vld [vmem:[#allocation6 + $0x550] sm:$0xff]
    %v311 = vld [vmem:[#allocation6 + $0x558] sm:$0xff]
    %v312 = vld [vmem:[#allocation6 + $0x560] sm:$0xff]
    %v313 = vld [vmem:[#allocation6 + $0x568] sm:$0xff]
    %v314 = vld [vmem:[#allocation6 + $0x570] sm:$0xff]
    %v315 = vld [vmem:[#allocation6 + $0x578] sm:$0xff]
    %v316 = vld [vmem:[#allocation6 + $0x580] sm:$0xff]
    %v317 = vld [vmem:[#allocation6 + $0x588] sm:$0xff]
    %v318 = vld [vmem:[#allocation6 + $0x590] sm:$0xff]
    %v319 = vld [vmem:[#allocation6 + $0x598] sm:$0xff]
    %v320 = vld [vmem:[#allocation6 + $0x5a0] sm:$0xff]
    %v321 = vld [vmem:[#allocation6 + $0x5a8] sm:$0xff]
    %v322 = vld [vmem:[#allocation6 + $0x5b0] sm:$0xff]
    %v323 = vld [vmem:[#allocation6 + $0x5b8] sm:$0xff]
    %v324 = vld [vmem:[#allocation6 + $0x5c0] sm:$0xff]
    %v325 = vld [vmem:[#allocation6 + $0x5c8] sm:$0xff]
    %v326 = vld [vmem:[#allocation6 + $0x5d0] sm:$0xff]
    %v327 = vld [vmem:[#allocation6 + $0x5d8] sm:$0xff]
    %v328 = vld [vmem:[#allocation6 + $0x5e0] sm:$0xff]
    %v329 = vld [vmem:[#allocation6 + $0x5e8] sm:$0xff]
    %v330 = vld [vmem:[#allocation6 + $0x5f0] sm:$0xff]
    %v331 = vld [vmem:[#allocation6 + $0x5f8] sm:$0xff]
    %v332 = vld [vmem:[#allocation6 + $0x600] sm:$0xff]
    %v333 = vld [vmem:[#allocation6 + $0x608] sm:$0xff]
    %v334 = vld [vmem:[#allocation6 + $0x610] sm:$0xff]
    %v335 = vld [vmem:[#allocation6 + $0x618] sm:$0xff]
    %v336 = vld [vmem:[#allocation6 + $0x620] sm:$0xff]
    %v337 = vld [vmem:[#allocation6 + $0x628] sm:$0xff]
    %v338 = vld [vmem:[#allocation6 + $0x630] sm:$0xff]
    %v339 = vld [vmem:[#allocation6 + $0x638] sm:$0xff]
    %v340 = vld [vmem:[#allocation6 + $0x640] sm:$0xff]
    %v341 = vld [vmem:[#allocation6 + $0x648] sm:$0xff]
    %v342 = vld [vmem:[#allocation6 + $0x650] sm:$0xff]
    %v343 = vld [vmem:[#allocation6 + $0x658] sm:$0xff]
    %v344 = vld [vmem:[#allocation6 + $0x660] sm:$0xff]
    %v345 = vld [vmem:[#allocation6 + $0x668] sm:$0xff]
    %v346 = vld [vmem:[#allocation6 + $0x670] sm:$0xff]
    %v347 = vld [vmem:[#allocation6 + $0x678] sm:$0xff]
    %v348 = vld [vmem:[#allocation6 + $0x680] sm:$0xff]
    %v349 = vld [vmem:[#allocation6 + $0x688] sm:$0xff]
    %v350 = vld [vmem:[#allocation6 + $0x690] sm:$0xff]
    %v351 = vld [vmem:[#allocation6 + $0x698] sm:$0xff]
    %v352 = vld [vmem:[#allocation6 + $0x6a0] sm:$0xff]
    %v353 = vld [vmem:[#allocation6 + $0x6a8] sm:$0xff]
    %v354 = vld [vmem:[#allocation6 + $0x6b0] sm:$0xff]
    %v355 = vld [vmem:[#allocation6 + $0x6b8] sm:$0xff]
    %v356 = vld [vmem:[#allocation6 + $0x6c0] sm:$0xff]
    %v357 = vld [vmem:[#allocation6 + $0x6c8] sm:$0xff]
    %v358 = vld [vmem:[#allocation6 + $0x6d0] sm:$0xff]
    %v359 = vld [vmem:[#allocation6 + $0x6d8] sm:$0xff]
    %v360 = vld [vmem:[#allocation6 + $0x6e0] sm:$0xff]
    %v361 = vld [vmem:[#allocation6 + $0x6e8] sm:$0xff]
    %v362 = vld [vmem:[#allocation6 + $0x6f0] sm:$0xff]
    %v363 = vld [vmem:[#allocation6 + $0x6f8] sm:$0xff]
    %v364 = vld [vmem:[#allocation6 + $0x700] sm:$0xff]
    %v365 = vld [vmem:[#allocation6 + $0x708] sm:$0xff]
    %v366 = vld [vmem:[#allocation6 + $0x710] sm:$0xff]
    %v367 = vld [vmem:[#allocation6 + $0x718] sm:$0xff]
    %v368 = vld [vmem:[#allocation6 + $0x720] sm:$0xff]
    %v369 = vld [vmem:[#allocation6 + $0x728] sm:$0xff]
    %v370 = vld [vmem:[#allocation6 + $0x730] sm:$0xff]
    %v371 = vld [vmem:[#allocation6 + $0x738] sm:$0xff]
    %v372 = vld [vmem:[#allocation6 + $0x740] sm:$0xff]
    %v373 = vld [vmem:[#allocation6 + $0x748] sm:$0xff]
    %v374 = vld [vmem:[#allocation6 + $0x750] sm:$0xff]
    %v375 = vld [vmem:[#allocation6 + $0x758] sm:$0xff]
    %v376 = vld [vmem:[#allocation6 + $0x760] sm:$0xff]
    %v377 = vld [vmem:[#allocation6 + $0x768] sm:$0xff]
    %v378 = vld [vmem:[#allocation6 + $0x770] sm:$0xff]
    %v379 = vld [vmem:[#allocation6 + $0x778] sm:$0xff]
    %v380 = vld [vmem:[#allocation6 + $0x780] sm:$0xff]
    %v381 = vld [vmem:[#allocation6 + $0x788] sm:$0xff]
    %v382 = vld [vmem:[#allocation6 + $0x790] sm:$0xff]
    %v383 = vld [vmem:[#allocation6 + $0x798] sm:$0xff]
    %v384 = vld [vmem:[#allocation6 + $0x7a0] sm:$0xff]
    %v385 = vld [vmem:[#allocation6 + $0x7a8] sm:$0xff]
    %v386 = vld [vmem:[#allocation6 + $0x7b0] sm:$0xff]
    %v387 = vld [vmem:[#allocation6 + $0x7b8] sm:$0xff]
    %v388 = vld [vmem:[#allocation6 + $0x7c0] sm:$0xff]
    %v389 = vld [vmem:[#allocation6 + $0x7c8] sm:$0xff]
    %v390 = vld [vmem:[#allocation6 + $0x7d0] sm:$0xff]
    %v391 = vld [vmem:[#allocation6 + $0x7d8] sm:$0xff]
    %v392 = vld [vmem:[#allocation6 + $0x7e0] sm:$0xff]
    %v393 = vld [vmem:[#allocation6 + $0x7e8] sm:$0xff]
    %v394 = vld [vmem:[#allocation6 + $0x7f0] sm:$0xff]
    %v395 = vld [vmem:[#allocation6 + $0x7f8] sm:$0xff]
    %v396 = vld [vmem:[#allocation6 + $0x800] sm:$0xff]
    %v397 = vld [vmem:[#allocation6 + $0x808] sm:$0xff]
    %v398 = vld [vmem:[#allocation6 + $0x810] sm:$0xff]
    %v399 = vld [vmem:[#allocation6 + $0x818] sm:$0xff]
    %v400 = vld [vmem:[#allocation6 + $0x820] sm:$0xff]
    %v401 = vld [vmem:[#allocation6 + $0x828] sm:$0xff]
    %v402 = vld [vmem:[#allocation6 + $0x830] sm:$0xff]
    %v403 = vld [vmem:[#allocation6 + $0x838] sm:$0xff]
    %v404 = vld [vmem:[#allocation6 + $0x840] sm:$0xff]
    %v405 = vld [vmem:[#allocation6 + $0x848] sm:$0xff]
    %v406 = vld [vmem:[#allocation6 + $0x850] sm:$0xff]
    %v407 = vld [vmem:[#allocation6 + $0x858] sm:$0xff]
    %v408 = vld [vmem:[#allocation6 + $0x860] sm:$0xff]
    %v409 = vld [vmem:[#allocation6 + $0x868] sm:$0xff]
    %v410 = vld [vmem:[#allocation6 + $0x870] sm:$0xff]
    %v411 = vld [vmem:[#allocation6 + $0x878] sm:$0xff]
    %v412 = vld [vmem:[#allocation6 + $0x880] sm:$0xff]
    %v413 = vld [vmem:[#allocation6 + $0x888] sm:$0xff]
    %v414 = vld [vmem:[#allocation6 + $0x890] sm:$0xff]
    %v415 = vld [vmem:[#allocation6 + $0x898] sm:$0xff]
    %v416 = vld [vmem:[#allocation6 + $0x8a0] sm:$0xff]
    %v417 = vld [vmem:[#allocation6 + $0x8a8] sm:$0xff]
    %v418 = vld [vmem:[#allocation6 + $0x8b0] sm:$0xff]
    %v419 = vld [vmem:[#allocation6 + $0x8b8] sm:$0xff]
    %v420 = vld [vmem:[#allocation6 + $0x8c0] sm:$0xff]
    %v421 = vld [vmem:[#allocation6 + $0x8c8] sm:$0xff]
    %v422 = vld [vmem:[#allocation6 + $0x8d0] sm:$0xff]
    %v423 = vld [vmem:[#allocation6 + $0x8d8] sm:$0xff]
    %v424 = vld [vmem:[#allocation6 + $0x8e0] sm:$0xff]
    %v425 = vld [vmem:[#allocation6 + $0x8e8] sm:$0xff]
    %v426 = vld [vmem:[#allocation6 + $0x8f0] sm:$0xff]
    %v427 = vld [vmem:[#allocation6 + $0x8f8] sm:$0xff]
    %v428 = vld [vmem:[#allocation8] sm:$0x3f]
    %v430 = vperm.slane %v428, 0
    %v431 = vperm.slane %v428, 1
    %v432 = vperm.slane %v428, 2
    %v433 = vperm.slane %v428, 3
    %v434 = vperm.slane %v428, 4
    %v435 = vperm.slane %v428, 5
    %v730 = vunpack.c.l.b16 %v140
    %v731 = vunpack.c.h.b16 %v140
    %v732 = vunpack.c.l.b16 %v141
    %v733 = vunpack.c.h.b16 %v141
    %v734 = vunpack.c.l.b16 %v142
    %v735 = vunpack.c.h.b16 %v142
    %v736 = vunpack.c.l.b16 %v143
    %v737 = vunpack.c.h.b16 %v143
    %v738 = vunpack.c.l.b16 %v144
    %v739 = vunpack.c.h.b16 %v144
    %v740 = vunpack.c.l.b16 %v145
    %v741 = vunpack.c.h.b16 %v145
    %v742 = vunpack.c.l.b16 %v146
    %v743 = vunpack.c.h.b16 %v146
    %v744 = vunpack.c.l.b16 %v147
    %v745 = vunpack.c.h.b16 %v147
    %v746 = vunpack.c.l.b16 %v148
    %v747 = vunpack.c.h.b16 %v148
    %v748 = vunpack.c.l.b16 %v149
    %v749 = vunpack.c.h.b16 %v149
    %v750 = vunpack.c.l.b16 %v150
    %v751 = vunpack.c.h.b16 %v150
    %v752 = vunpack.c.l.b16 %v151
    %v753 = vunpack.c.h.b16 %v151
    %v754 = vunpack.c.l.b16 %v152
    %v755 = vunpack.c.h.b16 %v152
    %v756 = vunpack.c.l.b16 %v153
    %v757 = vunpack.c.h.b16 %v153
    %v758 = vunpack.c.l.b16 %v154
    %v759 = vunpack.c.h.b16 %v154
    %v760 = vunpack.c.l.b16 %v155
    %v761 = vunpack.c.h.b16 %v155
    %v762 = vunpack.c.l.b16 %v156
    %v763 = vunpack.c.h.b16 %v156
    %v764 = vunpack.c.l.b16 %v157
    %v765 = vunpack.c.h.b16 %v157
    %v766 = vunpack.c.l.b16 %v158
    %v767 = vunpack.c.h.b16 %v158
    %v768 = vunpack.c.l.b16 %v159
    %v769 = vunpack.c.h.b16 %v159
    %v770 = vunpack.c.l.b16 %v160
    %v771 = vunpack.c.h.b16 %v160
    %v772 = vunpack.c.l.b16 %v161
    %v773 = vunpack.c.h.b16 %v161
    %v774 = vunpack.c.l.b16 %v162
    %v775 = vunpack.c.h.b16 %v162
    %v776 = vunpack.c.l.b16 %v163
    %v777 = vunpack.c.h.b16 %v163
    %v778 = vunpack.c.l.b16 %v164
    %v779 = vunpack.c.h.b16 %v164
    %v780 = vunpack.c.l.b16 %v165
    %v781 = vunpack.c.h.b16 %v165
    %v782 = vunpack.c.l.b16 %v166
    %v783 = vunpack.c.h.b16 %v166
    %v784 = vunpack.c.l.b16 %v167
    %v785 = vunpack.c.h.b16 %v167
    %v786 = vunpack.c.l.b16 %v168
    %v787 = vunpack.c.h.b16 %v168
    %v788 = vunpack.c.l.b16 %v169
    %v789 = vunpack.c.h.b16 %v169
    %v790 = vunpack.c.l.b16 %v170
    %v791 = vunpack.c.h.b16 %v170
    %v792 = vunpack.c.l.b16 %v171
    %v793 = vunpack.c.h.b16 %v171
    %v794 = vunpack.c.l.b16 %v172
    %v795 = vunpack.c.h.b16 %v172
    %v796 = vunpack.c.l.b16 %v173
    %v797 = vunpack.c.h.b16 %v173
    %v798 = vunpack.c.l.b16 %v174
    %v799 = vunpack.c.h.b16 %v174
    %v800 = vunpack.c.l.b16 %v175
    %v801 = vunpack.c.h.b16 %v175
    %v802 = vunpack.c.l.b16 %v176
    %v803 = vunpack.c.h.b16 %v176
    %v804 = vunpack.c.l.b16 %v177
    %v805 = vunpack.c.h.b16 %v177
    %v806 = vunpack.c.l.b16 %v178
    %v807 = vunpack.c.h.b16 %v178
    %v808 = vunpack.c.l.b16 %v179
    %v809 = vunpack.c.h.b16 %v179
    %v810 = vunpack.c.l.b16 %v180
    %v811 = vunpack.c.h.b16 %v180
    %v812 = vunpack.c.l.b16 %v181
    %v813 = vunpack.c.h.b16 %v181
    %v814 = vunpack.c.l.b16 %v182
    %v815 = vunpack.c.h.b16 %v182
    %v816 = vunpack.c.l.b16 %v183
    %v817 = vunpack.c.h.b16 %v183
    %v818 = vunpack.c.l.b16 %v184
    %v819 = vunpack.c.h.b16 %v184
    %v820 = vunpack.c.l.b16 %v185
    %v821 = vunpack.c.h.b16 %v185
    %v822 = vunpack.c.l.b16 %v186
    %v823 = vunpack.c.h.b16 %v186
    %v824 = vunpack.c.l.b16 %v187
    %v825 = vunpack.c.h.b16 %v187
    %v826 = vunpack.c.l.b16 %v188
    %v827 = vunpack.c.h.b16 %v188
    %v828 = vunpack.c.l.b16 %v189
    %v829 = vunpack.c.h.b16 %v189
    %v830 = vunpack.c.l.b16 %v190
    %v831 = vunpack.c.h.b16 %v190
    %v832 = vunpack.c.l.b16 %v191
    %v833 = vunpack.c.h.b16 %v191
    %v834 = vunpack.c.l.b16 %v192
    %v835 = vunpack.c.h.b16 %v192
    %v836 = vunpack.c.l.b16 %v193
    %v837 = vunpack.c.h.b16 %v193
    %v838 = vunpack.c.l.b16 %v194
    %v839 = vunpack.c.h.b16 %v194
    %v840 = vunpack.c.l.b16 %v195
    %v841 = vunpack.c.h.b16 %v195
    %v842 = vunpack.c.l.b16 %v196
    %v843 = vunpack.c.h.b16 %v196
    %v844 = vunpack.c.l.b16 %v197
    %v845 = vunpack.c.h.b16 %v197
    %v846 = vunpack.c.l.b16 %v198
    %v847 = vunpack.c.h.b16 %v198
    %v848 = vunpack.c.l.b16 %v199
    %v849 = vunpack.c.h.b16 %v199
    %v850 = vunpack.c.l.b16 %v200
    %v851 = vunpack.c.h.b16 %v200
    %v852 = vunpack.c.l.b16 %v201
    %v853 = vunpack.c.h.b16 %v201
    %v854 = vunpack.c.l.b16 %v202
    %v855 = vunpack.c.h.b16 %v202
    %v856 = vunpack.c.l.b16 %v203
    %v857 = vunpack.c.h.b16 %v203
    %v858 = vunpack.c.l.b16 %v204
    %v859 = vunpack.c.h.b16 %v204
    %v860 = vunpack.c.l.b16 %v205
    %v861 = vunpack.c.h.b16 %v205
    %v862 = vunpack.c.l.b16 %v206
    %v863 = vunpack.c.h.b16 %v206
    %v864 = vunpack.c.l.b16 %v207
    %v865 = vunpack.c.h.b16 %v207
    %v866 = vunpack.c.l.b16 %v208
    %v867 = vunpack.c.h.b16 %v208
    %v868 = vunpack.c.l.b16 %v209
    %v869 = vunpack.c.h.b16 %v209
    %v870 = vunpack.c.l.b16 %v210
    %v871 = vunpack.c.h.b16 %v210
    %v872 = vunpack.c.l.b16 %v211
    %v873 = vunpack.c.h.b16 %v211
    %v874 = vunpack.c.l.b16 %v212
    %v875 = vunpack.c.h.b16 %v212
    %v876 = vunpack.c.l.b16 %v213
    %v877 = vunpack.c.h.b16 %v213
    %v878 = vunpack.c.l.b16 %v214
    %v879 = vunpack.c.h.b16 %v214
    %v880 = vunpack.c.l.b16 %v215
    %v881 = vunpack.c.h.b16 %v215
    %v882 = vunpack.c.l.b16 %v216
    %v883 = vunpack.c.h.b16 %v216
    %v884 = vunpack.c.l.b16 %v217
    %v885 = vunpack.c.h.b16 %v217
    %v886 = vunpack.c.l.b16 %v218
    %v887 = vunpack.c.h.b16 %v218
    %v888 = vunpack.c.l.b16 %v219
    %v889 = vunpack.c.h.b16 %v219
    %v890 = vunpack.c.l.b16 %v220
    %v891 = vunpack.c.h.b16 %v220
    %v892 = vunpack.c.l.b16 %v221
    %v893 = vunpack.c.h.b16 %v221
    %v894 = vunpack.c.l.b16 %v222
    %v895 = vunpack.c.h.b16 %v222
    %v896 = vunpack.c.l.b16 %v223
    %v897 = vunpack.c.h.b16 %v223
    %v898 = vunpack.c.l.b16 %v224
    %v899 = vunpack.c.h.b16 %v224
    %v900 = vunpack.c.l.b16 %v225
    %v901 = vunpack.c.h.b16 %v225
    %v902 = vunpack.c.l.b16 %v226
    %v903 = vunpack.c.h.b16 %v226
    %v904 = vunpack.c.l.b16 %v227
    %v905 = vunpack.c.h.b16 %v227
    %v906 = vunpack.c.l.b16 %v228
    %v907 = vunpack.c.h.b16 %v228
    %v908 = vunpack.c.l.b16 %v229
    %v909 = vunpack.c.h.b16 %v229
    %v910 = vunpack.c.l.b16 %v230
    %v911 = vunpack.c.h.b16 %v230
    %v912 = vunpack.c.l.b16 %v231
    %v913 = vunpack.c.h.b16 %v231
    %v914 = vunpack.c.l.b16 %v232
    %v915 = vunpack.c.h.b16 %v232
    %v916 = vunpack.c.l.b16 %v233
    %v917 = vunpack.c.h.b16 %v233
    %v918 = vunpack.c.l.b16 %v234
    %v919 = vunpack.c.h.b16 %v234
    %v920 = vunpack.c.l.b16 %v235
    %v921 = vunpack.c.h.b16 %v235
    %v922 = vunpack.c.l.b16 %v236
    %v923 = vunpack.c.h.b16 %v236
    %v924 = vunpack.c.l.b16 %v237
    %v925 = vunpack.c.h.b16 %v237
    %v926 = vunpack.c.l.b16 %v238
    %v927 = vunpack.c.h.b16 %v238
    %v928 = vunpack.c.l.b16 %v239
    %v929 = vunpack.c.h.b16 %v239
    %v930 = vunpack.c.l.b16 %v240
    %v931 = vunpack.c.h.b16 %v240
    %v932 = vunpack.c.l.b16 %v241
    %v933 = vunpack.c.h.b16 %v241
    %v934 = vunpack.c.l.b16 %v242
    %v935 = vunpack.c.h.b16 %v242
    %v936 = vunpack.c.l.b16 %v243
    %v937 = vunpack.c.h.b16 %v243
    %v938 = vunpack.c.l.b16 %v244
    %v939 = vunpack.c.h.b16 %v244
    %v940 = vunpack.c.l.b16 %v245
    %v941 = vunpack.c.h.b16 %v245
    %v942 = vunpack.c.l.b16 %v246
    %v943 = vunpack.c.h.b16 %v246
    %v944 = vunpack.c.l.b16 %v247
    %v945 = vunpack.c.h.b16 %v247
    %v946 = vunpack.c.l.b16 %v248
    %v947 = vunpack.c.h.b16 %v248
    %v948 = vunpack.c.l.b16 %v249
    %v949 = vunpack.c.h.b16 %v249
    %v950 = vunpack.c.l.b16 %v250
    %v951 = vunpack.c.h.b16 %v250
    %v952 = vunpack.c.l.b16 %v251
    %v953 = vunpack.c.h.b16 %v251
    %v954 = vunpack.c.l.b16 %v252
    %v955 = vunpack.c.h.b16 %v252
    %v956 = vunpack.c.l.b16 %v253
    %v957 = vunpack.c.h.b16 %v253
    %v958 = vunpack.c.l.b16 %v254
    %v959 = vunpack.c.h.b16 %v254
    %v960 = vunpack.c.l.b16 %v255
    %v961 = vunpack.c.h.b16 %v255
    %v962 = vunpack.c.l.b16 %v256
    %v963 = vunpack.c.h.b16 %v256
    %v964 = vunpack.c.l.b16 %v257
    %v965 = vunpack.c.h.b16 %v257
    %v966 = vunpack.c.l.b16 %v258
    %v967 = vunpack.c.h.b16 %v258
    %v968 = vunpack.c.l.b16 %v259
    %v969 = vunpack.c.h.b16 %v259
    %v970 = vunpack.c.l.b16 %v260
    %v971 = vunpack.c.h.b16 %v260
    %v972 = vunpack.c.l.b16 %v261
    %v973 = vunpack.c.h.b16 %v261
    %v974 = vunpack.c.l.b16 %v262
    %v975 = vunpack.c.h.b16 %v262
    %v976 = vunpack.c.l.b16 %v263
    %v977 = vunpack.c.h.b16 %v263
    %v978 = vunpack.c.l.b16 %v264
    %v979 = vunpack.c.h.b16 %v264
    %v980 = vunpack.c.l.b16 %v265
    %v981 = vunpack.c.h.b16 %v265
    %v982 = vunpack.c.l.b16 %v266
    %v983 = vunpack.c.h.b16 %v266
    %v984 = vunpack.c.l.b16 %v267
    %v985 = vunpack.c.h.b16 %v267
    %v986 = vunpack.c.l.b16 %v268
    %v987 = vunpack.c.h.b16 %v268
    %v988 = vunpack.c.l.b16 %v269
    %v989 = vunpack.c.h.b16 %v269
    %v990 = vunpack.c.l.b16 %v270
    %v991 = vunpack.c.h.b16 %v270
    %v992 = vunpack.c.l.b16 %v271
    %v993 = vunpack.c.h.b16 %v271
    %v994 = vunpack.c.l.b16 %v272
    %v995 = vunpack.c.h.b16 %v272
    %v996 = vunpack.c.l.b16 %v273
    %v997 = vunpack.c.h.b16 %v273
    %v998 = vunpack.c.l.b16 %v274
    %v999 = vunpack.c.h.b16 %v274
    %v1000 = vunpack.c.l.b16 %v275
    %v1001 = vunpack.c.h.b16 %v275
    %v1002 = vunpack.c.l.b16 %v276
    %v1003 = vunpack.c.h.b16 %v276
    %v1004 = vunpack.c.l.b16 %v277
    %v1005 = vunpack.c.h.b16 %v277
    %v1006 = vunpack.c.l.b16 %v278
    %v1007 = vunpack.c.h.b16 %v278
    %v1008 = vunpack.c.l.b16 %v279
    %v1009 = vunpack.c.h.b16 %v279
    %v1010 = vunpack.c.l.b16 %v280
    %v1011 = vunpack.c.h.b16 %v280
    %v1012 = vunpack.c.l.b16 %v281
    %v1013 = vunpack.c.h.b16 %v281
    %v1014 = vunpack.c.l.b16 %v282
    %v1015 = vunpack.c.h.b16 %v282
    %v1016 = vunpack.c.l.b16 %v283
    %v1017 = vunpack.c.h.b16 %v283
    %v1018 = vunpack.c.l.b16 %v284
    %v1019 = vunpack.c.h.b16 %v284
    %v1020 = vunpack.c.l.b16 %v285
    %v1021 = vunpack.c.h.b16 %v285
    %v1022 = vunpack.c.l.b16 %v286
    %v1023 = vunpack.c.h.b16 %v286
    %v1024 = vunpack.c.l.b16 %v287
    %v1025 = vunpack.c.h.b16 %v287
    %v1026 = vunpack.c.l.b16 %v288
    %v1027 = vunpack.c.h.b16 %v288
    %v1028 = vunpack.c.l.b16 %v289
    %v1029 = vunpack.c.h.b16 %v289
    %v1030 = vunpack.c.l.b16 %v290
    %v1031 = vunpack.c.h.b16 %v290
    %v1032 = vunpack.c.l.b16 %v291
    %v1033 = vunpack.c.h.b16 %v291
    %v1034 = vunpack.c.l.b16 %v292
    %v1035 = vunpack.c.h.b16 %v292
    %v1036 = vunpack.c.l.b16 %v293
    %v1037 = vunpack.c.h.b16 %v293
    %v1038 = vunpack.c.l.b16 %v294
    %v1039 = vunpack.c.h.b16 %v294
    %v1040 = vunpack.c.l.b16 %v295
    %v1041 = vunpack.c.h.b16 %v295
    %v1042 = vunpack.c.l.b16 %v296
    %v1043 = vunpack.c.h.b16 %v296
    %v1044 = vunpack.c.l.b16 %v297
    %v1045 = vunpack.c.h.b16 %v297
    %v1046 = vunpack.c.l.b16 %v298
    %v1047 = vunpack.c.h.b16 %v298
    %v1048 = vunpack.c.l.b16 %v299
    %v1049 = vunpack.c.h.b16 %v299
    %v1050 = vunpack.c.l.b16 %v300
    %v1051 = vunpack.c.h.b16 %v300
    %v1052 = vunpack.c.l.b16 %v301
    %v1053 = vunpack.c.h.b16 %v301
    %v1054 = vunpack.c.l.b16 %v302
    %v1055 = vunpack.c.h.b16 %v302
    %v1056 = vunpack.c.l.b16 %v303
    %v1057 = vunpack.c.h.b16 %v303
    %v1058 = vunpack.c.l.b16 %v304
    %v1059 = vunpack.c.h.b16 %v304
    %v1060 = vunpack.c.l.b16 %v305
    %v1061 = vunpack.c.h.b16 %v305
    %v1062 = vunpack.c.l.b16 %v306
    %v1063 = vunpack.c.h.b16 %v306
    %v1064 = vunpack.c.l.b16 %v307
    %v1065 = vunpack.c.h.b16 %v307
    %v1066 = vunpack.c.l.b16 %v308
    %v1067 = vunpack.c.h.b16 %v308
    %v1068 = vunpack.c.l.b16 %v309
    %v1069 = vunpack.c.h.b16 %v309
    %v1070 = vunpack.c.l.b16 %v310
    %v1071 = vunpack.c.h.b16 %v310
    %v1072 = vunpack.c.l.b16 %v311
    %v1073 = vunpack.c.h.b16 %v311
    %v1074 = vunpack.c.l.b16 %v312
    %v1075 = vunpack.c.h.b16 %v312
    %v1076 = vunpack.c.l.b16 %v313
    %v1077 = vunpack.c.h.b16 %v313
    %v1078 = vunpack.c.l.b16 %v314
    %v1079 = vunpack.c.h.b16 %v314
    %v1080 = vunpack.c.l.b16 %v315
    %v1081 = vunpack.c.h.b16 %v315
    %v1082 = vunpack.c.l.b16 %v316
    %v1083 = vunpack.c.h.b16 %v316
    %v1084 = vunpack.c.l.b16 %v317
    %v1085 = vunpack.c.h.b16 %v317
    %v1086 = vunpack.c.l.b16 %v318
    %v1087 = vunpack.c.h.b16 %v318
    %v1088 = vunpack.c.l.b16 %v319
    %v1089 = vunpack.c.h.b16 %v319
    %v1090 = vunpack.c.l.b16 %v320
    %v1091 = vunpack.c.h.b16 %v320
    %v1092 = vunpack.c.l.b16 %v321
    %v1093 = vunpack.c.h.b16 %v321
    %v1094 = vunpack.c.l.b16 %v322
    %v1095 = vunpack.c.h.b16 %v322
    %v1096 = vunpack.c.l.b16 %v323
    %v1097 = vunpack.c.h.b16 %v323
    %v1098 = vunpack.c.l.b16 %v324
    %v1099 = vunpack.c.h.b16 %v324
    %v1100 = vunpack.c.l.b16 %v325
    %v1101 = vunpack.c.h.b16 %v325
    %v1102 = vunpack.c.l.b16 %v326
    %v1103 = vunpack.c.h.b16 %v326
    %v1104 = vunpack.c.l.b16 %v327
    %v1105 = vunpack.c.h.b16 %v327
    %v1106 = vunpack.c.l.b16 %v328
    %v1107 = vunpack.c.h.b16 %v328
    %v1108 = vunpack.c.l.b16 %v329
    %v1109 = vunpack.c.h.b16 %v329
    %v1110 = vunpack.c.l.b16 %v330
    %v1111 = vunpack.c.h.b16 %v330
    %v1112 = vunpack.c.l.b16 %v331
    %v1113 = vunpack.c.h.b16 %v331
    %v1114 = vunpack.c.l.b16 %v332
    %v1115 = vunpack.c.h.b16 %v332
    %v1116 = vunpack.c.l.b16 %v333
    %v1117 = vunpack.c.h.b16 %v333
    %v1118 = vunpack.c.l.b16 %v334
    %v1119 = vunpack.c.h.b16 %v334
    %v1120 = vunpack.c.l.b16 %v335
    %v1121 = vunpack.c.h.b16 %v335
    %v1122 = vunpack.c.l.b16 %v336
    %v1123 = vunpack.c.h.b16 %v336
    %v1124 = vunpack.c.l.b16 %v337
    %v1125 = vunpack.c.h.b16 %v337
    %v1126 = vunpack.c.l.b16 %v338
    %v1127 = vunpack.c.h.b16 %v338
    %v1128 = vunpack.c.l.b16 %v339
    %v1129 = vunpack.c.h.b16 %v339
    %v1130 = vunpack.c.l.b16 %v340
    %v1131 = vunpack.c.h.b16 %v340
    %v1132 = vunpack.c.l.b16 %v341
    %v1133 = vunpack.c.h.b16 %v341
    %v1134 = vunpack.c.l.b16 %v342
    %v1135 = vunpack.c.h.b16 %v342
    %v1136 = vunpack.c.l.b16 %v343
    %v1137 = vunpack.c.h.b16 %v343
    %v1138 = vunpack.c.l.b16 %v344
    %v1139 = vunpack.c.h.b16 %v344
    %v1140 = vunpack.c.l.b16 %v345
    %v1141 = vunpack.c.h.b16 %v345
    %v1142 = vunpack.c.l.b16 %v346
    %v1143 = vunpack.c.h.b16 %v346
    %v1144 = vunpack.c.l.b16 %v347
    %v1145 = vunpack.c.h.b16 %v347
    %v1146 = vunpack.c.l.b16 %v348
    %v1147 = vunpack.c.h.b16 %v348
    %v1148 = vunpack.c.l.b16 %v349
    %v1149 = vunpack.c.h.b16 %v349
    %v1150 = vunpack.c.l.b16 %v350
    %v1151 = vunpack.c.h.b16 %v350
    %v1152 = vunpack.c.l.b16 %v351
    %v1153 = vunpack.c.h.b16 %v351
    %v1154 = vunpack.c.l.b16 %v352
    %v1155 = vunpack.c.h.b16 %v352
    %v1156 = vunpack.c.l.b16 %v353
    %v1157 = vunpack.c.h.b16 %v353
    %v1158 = vunpack.c.l.b16 %v354
    %v1159 = vunpack.c.h.b16 %v354
    %v1160 = vunpack.c.l.b16 %v355
    %v1161 = vunpack.c.h.b16 %v355
    %v1162 = vunpack.c.l.b16 %v356
    %v1163 = vunpack.c.h.b16 %v356
    %v1164 = vunpack.c.l.b16 %v357
    %v1165 = vunpack.c.h.b16 %v357
    %v1166 = vunpack.c.l.b16 %v358
    %v1167 = vunpack.c.h.b16 %v358
    %v1168 = vunpack.c.l.b16 %v359
    %v1169 = vunpack.c.h.b16 %v359
    %v1170 = vunpack.c.l.b16 %v360
    %v1171 = vunpack.c.h.b16 %v360
    %v1172 = vunpack.c.l.b16 %v361
    %v1173 = vunpack.c.h.b16 %v361
    %v1174 = vunpack.c.l.b16 %v362
    %v1175 = vunpack.c.h.b16 %v362
    %v1176 = vunpack.c.l.b16 %v363
    %v1177 = vunpack.c.h.b16 %v363
    %v1178 = vunpack.c.l.b16 %v364
    %v1179 = vunpack.c.h.b16 %v364
    %v1180 = vunpack.c.l.b16 %v365
    %v1181 = vunpack.c.h.b16 %v365
    %v1182 = vunpack.c.l.b16 %v366
    %v1183 = vunpack.c.h.b16 %v366
    %v1184 = vunpack.c.l.b16 %v367
    %v1185 = vunpack.c.h.b16 %v367
    %v1186 = vunpack.c.l.b16 %v368
    %v1187 = vunpack.c.h.b16 %v368
    %v1188 = vunpack.c.l.b16 %v369
    %v1189 = vunpack.c.h.b16 %v369
    %v1190 = vunpack.c.l.b16 %v370
    %v1191 = vunpack.c.h.b16 %v370
    %v1192 = vunpack.c.l.b16 %v371
    %v1193 = vunpack.c.h.b16 %v371
    %v1194 = vunpack.c.l.b16 %v372
    %v1195 = vunpack.c.h.b16 %v372
    %v1196 = vunpack.c.l.b16 %v373
    %v1197 = vunpack.c.h.b16 %v373
    %v1198 = vunpack.c.l.b16 %v374
    %v1199 = vunpack.c.h.b16 %v374
    %v1200 = vunpack.c.l.b16 %v375
    %v1201 = vunpack.c.h.b16 %v375
    %v1202 = vunpack.c.l.b16 %v376
    %v1203 = vunpack.c.h.b16 %v376
    %v1204 = vunpack.c.l.b16 %v377
    %v1205 = vunpack.c.h.b16 %v377
    %v1206 = vunpack.c.l.b16 %v378
    %v1207 = vunpack.c.h.b16 %v378
    %v1208 = vunpack.c.l.b16 %v379
    %v1209 = vunpack.c.h.b16 %v379
    %v1210 = vunpack.c.l.b16 %v380
    %v1211 = vunpack.c.h.b16 %v380
    %v1212 = vunpack.c.l.b16 %v381
    %v1213 = vunpack.c.h.b16 %v381
    %v1214 = vunpack.c.l.b16 %v382
    %v1215 = vunpack.c.h.b16 %v382
    %v1216 = vunpack.c.l.b16 %v383
    %v1217 = vunpack.c.h.b16 %v383
    %v1218 = vunpack.c.l.b16 %v384
    %v1219 = vunpack.c.h.b16 %v384
    %v1220 = vunpack.c.l.b16 %v385
    %v1221 = vunpack.c.h.b16 %v385
    %v1222 = vunpack.c.l.b16 %v386
    %v1223 = vunpack.c.h.b16 %v386
    %v1224 = vunpack.c.l.b16 %v387
    %v1225 = vunpack.c.h.b16 %v387
    %v1226 = vunpack.c.l.b16 %v388
    %v1227 = vunpack.c.h.b16 %v388
    %v1228 = vunpack.c.l.b16 %v389
    %v1229 = vunpack.c.h.b16 %v389
    %v1230 = vunpack.c.l.b16 %v390
    %v1231 = vunpack.c.h.b16 %v390
    %v1232 = vunpack.c.l.b16 %v391
    %v1233 = vunpack.c.h.b16 %v391
    %v1234 = vunpack.c.l.b16 %v392
    %v1235 = vunpack.c.h.b16 %v392
    %v1236 = vunpack.c.l.b16 %v393
    %v1237 = vunpack.c.h.b16 %v393
    %v1238 = vunpack.c.l.b16 %v394
    %v1239 = vunpack.c.h.b16 %v394
    %v1240 = vunpack.c.l.b16 %v395
    %v1241 = vunpack.c.h.b16 %v395
    %v1242 = vunpack.c.l.b16 %v396
    %v1243 = vunpack.c.h.b16 %v396
    %v1244 = vunpack.c.l.b16 %v397
    %v1245 = vunpack.c.h.b16 %v397
    %v1246 = vunpack.c.l.b16 %v398
    %v1247 = vunpack.c.h.b16 %v398
    %v1248 = vunpack.c.l.b16 %v399
    %v1249 = vunpack.c.h.b16 %v399
    %v1250 = vunpack.c.l.b16 %v400
    %v1251 = vunpack.c.h.b16 %v400
    %v1252 = vunpack.c.l.b16 %v401
    %v1253 = vunpack.c.h.b16 %v401
    %v1254 = vunpack.c.l.b16 %v402
    %v1255 = vunpack.c.h.b16 %v402
    %v1256 = vunpack.c.l.b16 %v403
    %v1257 = vunpack.c.h.b16 %v403
    %v1258 = vunpack.c.l.b16 %v404
    %v1259 = vunpack.c.h.b16 %v404
    %v1260 = vunpack.c.l.b16 %v405
    %v1261 = vunpack.c.h.b16 %v405
    %v1262 = vunpack.c.l.b16 %v406
    %v1263 = vunpack.c.h.b16 %v406
    %v1264 = vunpack.c.l.b16 %v407
    %v1265 = vunpack.c.h.b16 %v407
    %v1266 = vunpack.c.l.b16 %v408
    %v1267 = vunpack.c.h.b16 %v408
    %v1268 = vunpack.c.l.b16 %v409
    %v1269 = vunpack.c.h.b16 %v409
    %v1270 = vunpack.c.l.b16 %v410
    %v1271 = vunpack.c.h.b16 %v410
    %v1272 = vunpack.c.l.b16 %v411
    %v1273 = vunpack.c.h.b16 %v411
    %v1274 = vunpack.c.l.b16 %v412
    %v1275 = vunpack.c.h.b16 %v412
    %v1276 = vunpack.c.l.b16 %v413
    %v1277 = vunpack.c.h.b16 %v413
    %v1278 = vunpack.c.l.b16 %v414
    %v1279 = vunpack.c.h.b16 %v414
    %v1280 = vunpack.c.l.b16 %v415
    %v1281 = vunpack.c.h.b16 %v415
    %v1282 = vunpack.c.l.b16 %v416
    %v1283 = vunpack.c.h.b16 %v416
    %v1284 = vunpack.c.l.b16 %v417
    %v1285 = vunpack.c.h.b16 %v417
    %v1286 = vunpack.c.l.b16 %v418
    %v1287 = vunpack.c.h.b16 %v418
    %v1288 = vunpack.c.l.b16 %v419
    %v1289 = vunpack.c.h.b16 %v419
    %v1290 = vunpack.c.l.b16 %v420
    %v1291 = vunpack.c.h.b16 %v420
    %v1292 = vunpack.c.l.b16 %v421
    %v1293 = vunpack.c.h.b16 %v421
    %v1294 = vunpack.c.l.b16 %v422
    %v1295 = vunpack.c.h.b16 %v422
    %v1296 = vunpack.c.l.b16 %v423
    %v1297 = vunpack.c.h.b16 %v423
    %v1298 = vunpack.c.l.b16 %v424
    %v1299 = vunpack.c.h.b16 %v424
    %v1300 = vunpack.c.l.b16 %v425
    %v1301 = vunpack.c.h.b16 %v425
    %v1302 = vunpack.c.l.b16 %v426
    %v1303 = vunpack.c.h.b16 %v426
    %v1304 = vunpack.c.l.b16 %v427
    %v1305 = vunpack.c.h.b16 %v427
    %v1306 = vpack.c.b16 %v736, %v730
    %v1307 = vpack.c.b16 %v737, %v731
    %v1308 = vpack.c.b16 %v738, %v732
    %v1309 = vpack.c.b16 %v739, %v733
    %v1310 = vpack.c.b16 %v740, %v734
    %v1311 = vpack.c.b16 %v741, %v735
    %v1312 = vpack.c.b16 %v748, %v742
    %v1313 = vpack.c.b16 %v749, %v743
    %v1314 = vpack.c.b16 %v750, %v744
    %v1315 = vpack.c.b16 %v751, %v745
    %v1316 = vpack.c.b16 %v752, %v746
    %v1317 = vpack.c.b16 %v753, %v747
    %v1318 = vpack.c.b16 %v760, %v754
    %v1319 = vpack.c.b16 %v761, %v755
    %v1320 = vpack.c.b16 %v762, %v756
    %v1321 = vpack.c.b16 %v763, %v757
    %v1322 = vpack.c.b16 %v764, %v758
    %v1323 = vpack.c.b16 %v765, %v759
    %v1324 = vpack.c.b16 %v772, %v766
    %v1325 = vpack.c.b16 %v773, %v767
    %v1326 = vpack.c.b16 %v774, %v768
    %v1327 = vpack.c.b16 %v775, %v769
    %v1328 = vpack.c.b16 %v776, %v770
    %v1329 = vpack.c.b16 %v777, %v771
    %v1330 = vpack.c.b16 %v784, %v778
    %v1331 = vpack.c.b16 %v785, %v779
    %v1332 = vpack.c.b16 %v786, %v780
    %v1333 = vpack.c.b16 %v787, %v781
    %v1334 = vpack.c.b16 %v788, %v782
    %v1335 = vpack.c.b16 %v789, %v783
    %v1336 = vpack.c.b16 %v796, %v790
    %v1337 = vpack.c.b16 %v797, %v791
    %v1338 = vpack.c.b16 %v798, %v792
    %v1339 = vpack.c.b16 %v799, %v793
    %v1340 = vpack.c.b16 %v800, %v794
    %v1341 = vpack.c.b16 %v801, %v795
    %v1342 = vpack.c.b16 %v808, %v802
    %v1343 = vpack.c.b16 %v809, %v803
    %v1344 = vpack.c.b16 %v810, %v804
    %v1345 = vpack.c.b16 %v811, %v805
    %v1346 = vpack.c.b16 %v812, %v806
    %v1347 = vpack.c.b16 %v813, %v807
    %v1348 = vpack.c.b16 %v820, %v814
    %v1349 = vpack.c.b16 %v821, %v815
    %v1350 = vpack.c.b16 %v822, %v816
    %v1351 = vpack.c.b16 %v823, %v817
    %v1352 = vpack.c.b16 %v824, %v818
    %v1353 = vpack.c.b16 %v825, %v819
    %v1354 = vpack.c.b16 %v832, %v826
    %v1355 = vpack.c.b16 %v833, %v827
    %v1356 = vpack.c.b16 %v834, %v828
    %v1357 = vpack.c.b16 %v835, %v829
    %v1358 = vpack.c.b16 %v836, %v830
    %v1359 = vpack.c.b16 %v837, %v831
    %v1360 = vpack.c.b16 %v844, %v838
    %v1361 = vpack.c.b16 %v845, %v839
    %v1362 = vpack.c.b16 %v846, %v840
    %v1363 = vpack.c.b16 %v847, %v841
    %v1364 = vpack.c.b16 %v848, %v842
    %v1365 = vpack.c.b16 %v849, %v843
    %v1366 = vpack.c.b16 %v856, %v850
    %v1367 = vpack.c.b16 %v857, %v851
    %v1368 = vpack.c.b16 %v858, %v852
    %v1369 = vpack.c.b16 %v859, %v853
    %v1370 = vpack.c.b16 %v860, %v854
    %v1371 = vpack.c.b16 %v861, %v855
    %v1372 = vpack.c.b16 %v868, %v862
    %v1373 = vpack.c.b16 %v869, %v863
    %v1374 = vpack.c.b16 %v870, %v864
    %v1375 = vpack.c.b16 %v871, %v865
    %v1376 = vpack.c.b16 %v872, %v866
    %v1377 = vpack.c.b16 %v873, %v867
    %v1378 = vpack.c.b16 %v880, %v874
    %v1379 = vpack.c.b16 %v881, %v875
    %v1380 = vpack.c.b16 %v882, %v876
    %v1381 = vpack.c.b16 %v883, %v877
    %v1382 = vpack.c.b16 %v884, %v878
    %v1383 = vpack.c.b16 %v885, %v879
    %v1384 = vpack.c.b16 %v892, %v886
    %v1385 = vpack.c.b16 %v893, %v887
    %v1386 = vpack.c.b16 %v894, %v888
    %v1387 = vpack.c.b16 %v895, %v889
    %v1388 = vpack.c.b16 %v896, %v890
    %v1389 = vpack.c.b16 %v897, %v891
    %v1390 = vpack.c.b16 %v904, %v898
    %v1391 = vpack.c.b16 %v905, %v899
    %v1392 = vpack.c.b16 %v906, %v900
    %v1393 = vpack.c.b16 %v907, %v901
    %v1394 = vpack.c.b16 %v908, %v902
    %v1395 = vpack.c.b16 %v909, %v903
    %v1396 = vpack.c.b16 %v916, %v910
    %v1397 = vpack.c.b16 %v917, %v911
    %v1398 = vpack.c.b16 %v918, %v912
    %v1399 = vpack.c.b16 %v919, %v913
    %v1400 = vpack.c.b16 %v920, %v914
    %v1401 = vpack.c.b16 %v921, %v915
    %v1402 = vpack.c.b16 %v928, %v922
    %v1403 = vpack.c.b16 %v929, %v923
    %v1404 = vpack.c.b16 %v930, %v924
    %v1405 = vpack.c.b16 %v931, %v925
    %v1406 = vpack.c.b16 %v932, %v926
    %v1407 = vpack.c.b16 %v933, %v927
    %v1408 = vpack.c.b16 %v940, %v934
    %v1409 = vpack.c.b16 %v941, %v935
    %v1410 = vpack.c.b16 %v942, %v936
    %v1411 = vpack.c.b16 %v943, %v937
    %v1412 = vpack.c.b16 %v944, %v938
    %v1413 = vpack.c.b16 %v945, %v939
    %v1414 = vpack.c.b16 %v952, %v946
    %v1415 = vpack.c.b16 %v953, %v947
    %v1416 = vpack.c.b16 %v954, %v948
    %v1417 = vpack.c.b16 %v955, %v949
    %v1418 = vpack.c.b16 %v956, %v950
    %v1419 = vpack.c.b16 %v957, %v951
    %v1420 = vpack.c.b16 %v964, %v958
    %v1421 = vpack.c.b16 %v965, %v959
    %v1422 = vpack.c.b16 %v966, %v960
    %v1423 = vpack.c.b16 %v967, %v961
    %v1424 = vpack.c.b16 %v968, %v962
    %v1425 = vpack.c.b16 %v969, %v963
    %v1426 = vpack.c.b16 %v976, %v970
    %v1427 = vpack.c.b16 %v977, %v971
    %v1428 = vpack.c.b16 %v978, %v972
    %v1429 = vpack.c.b16 %v979, %v973
    %v1430 = vpack.c.b16 %v980, %v974
    %v1431 = vpack.c.b16 %v981, %v975
    %v1432 = vpack.c.b16 %v988, %v982
    %v1433 = vpack.c.b16 %v989, %v983
    %v1434 = vpack.c.b16 %v990, %v984
    %v1435 = vpack.c.b16 %v991, %v985
    %v1436 = vpack.c.b16 %v992, %v986
    %v1437 = vpack.c.b16 %v993, %v987
    %v1438 = vpack.c.b16 %v1000, %v994
    %v1439 = vpack.c.b16 %v1001, %v995
    %v1440 = vpack.c.b16 %v1002, %v996
    %v1441 = vpack.c.b16 %v1003, %v997
    %v1442 = vpack.c.b16 %v1004, %v998
    %v1443 = vpack.c.b16 %v1005, %v999
    %v1444 = vpack.c.b16 %v1012, %v1006
    %v1445 = vpack.c.b16 %v1013, %v1007
    %v1446 = vpack.c.b16 %v1014, %v1008
    %v1447 = vpack.c.b16 %v1015, %v1009
    %v1448 = vpack.c.b16 %v1016, %v1010
    %v1449 = vpack.c.b16 %v1017, %v1011
    %v1450 = vpack.c.b16 %v1024, %v1018
    %v1451 = vpack.c.b16 %v1025, %v1019
    %v1452 = vpack.c.b16 %v1026, %v1020
    %v1453 = vpack.c.b16 %v1027, %v1021
    %v1454 = vpack.c.b16 %v1028, %v1022
    %v1455 = vpack.c.b16 %v1029, %v1023
    %v1456 = vpack.c.b16 %v1036, %v1030
    %v1457 = vpack.c.b16 %v1037, %v1031
    %v1458 = vpack.c.b16 %v1038, %v1032
    %v1459 = vpack.c.b16 %v1039, %v1033
    %v1460 = vpack.c.b16 %v1040, %v1034
    %v1461 = vpack.c.b16 %v1041, %v1035
    %v1462 = vpack.c.b16 %v1048, %v1042
    %v1463 = vpack.c.b16 %v1049, %v1043
    %v1464 = vpack.c.b16 %v1050, %v1044
    %v1465 = vpack.c.b16 %v1051, %v1045
    %v1466 = vpack.c.b16 %v1052, %v1046
    %v1467 = vpack.c.b16 %v1053, %v1047
    %v1468 = vpack.c.b16 %v1060, %v1054
    %v1469 = vpack.c.b16 %v1061, %v1055
    %v1470 = vpack.c.b16 %v1062, %v1056
    %v1471 = vpack.c.b16 %v1063, %v1057
    %v1472 = vpack.c.b16 %v1064, %v1058
    %v1473 = vpack.c.b16 %v1065, %v1059
    %v1474 = vpack.c.b16 %v1072, %v1066
    %v1475 = vpack.c.b16 %v1073, %v1067
    %v1476 = vpack.c.b16 %v1074, %v1068
    %v1477 = vpack.c.b16 %v1075, %v1069
    %v1478 = vpack.c.b16 %v1076, %v1070
    %v1479 = vpack.c.b16 %v1077, %v1071
    %v1480 = vpack.c.b16 %v1084, %v1078
    %v1481 = vpack.c.b16 %v1085, %v1079
    %v1482 = vpack.c.b16 %v1086, %v1080
    %v1483 = vpack.c.b16 %v1087, %v1081
    %v1484 = vpack.c.b16 %v1088, %v1082
    %v1485 = vpack.c.b16 %v1089, %v1083
    %v1486 = vpack.c.b16 %v1096, %v1090
    %v1487 = vpack.c.b16 %v1097, %v1091
    %v1488 = vpack.c.b16 %v1098, %v1092
    %v1489 = vpack.c.b16 %v1099, %v1093
    %v1490 = vpack.c.b16 %v1100, %v1094
    %v1491 = vpack.c.b16 %v1101, %v1095
    %v1492 = vpack.c.b16 %v1108, %v1102
    %v1493 = vpack.c.b16 %v1109, %v1103
    %v1494 = vpack.c.b16 %v1110, %v1104
    %v1495 = vpack.c.b16 %v1111, %v1105
    %v1496 = vpack.c.b16 %v1112, %v1106
    %v1497 = vpack.c.b16 %v1113, %v1107
    %v1498 = vpack.c.b16 %v1120, %v1114
    %v1499 = vpack.c.b16 %v1121, %v1115
    %v1500 = vpack.c.b16 %v1122, %v1116
    %v1501 = vpack.c.b16 %v1123, %v1117
    %v1502 = vpack.c.b16 %v1124, %v1118
    %v1503 = vpack.c.b16 %v1125, %v1119
    %v1504 = vpack.c.b16 %v1132, %v1126
    %v1505 = vpack.c.b16 %v1133, %v1127
    %v1506 = vpack.c.b16 %v1134, %v1128
    %v1507 = vpack.c.b16 %v1135, %v1129
    %v1508 = vpack.c.b16 %v1136, %v1130
    %v1509 = vpack.c.b16 %v1137, %v1131
    %v1510 = vpack.c.b16 %v1144, %v1138
    %v1511 = vpack.c.b16 %v1145, %v1139
    %v1512 = vpack.c.b16 %v1146, %v1140
    %v1513 = vpack.c.b16 %v1147, %v1141
    %v1514 = vpack.c.b16 %v1148, %v1142
    %v1515 = vpack.c.b16 %v1149, %v1143
    %v1516 = vpack.c.b16 %v1156, %v1150
    %v1517 = vpack.c.b16 %v1157, %v1151
    %v1518 = vpack.c.b16 %v1158, %v1152
    %v1519 = vpack.c.b16 %v1159, %v1153
    %v1520 = vpack.c.b16 %v1160, %v1154
    %v1521 = vpack.c.b16 %v1161, %v1155
    %v1522 = vpack.c.b16 %v1168, %v1162
    %v1523 = vpack.c.b16 %v1169, %v1163
    %v1524 = vpack.c.b16 %v1170, %v1164
    %v1525 = vpack.c.b16 %v1171, %v1165
    %v1526 = vpack.c.b16 %v1172, %v1166
    %v1527 = vpack.c.b16 %v1173, %v1167
    %v1528 = vpack.c.b16 %v1180, %v1174
    %v1529 = vpack.c.b16 %v1181, %v1175
    %v1530 = vpack.c.b16 %v1182, %v1176
    %v1531 = vpack.c.b16 %v1183, %v1177
    %v1532 = vpack.c.b16 %v1184, %v1178
    %v1533 = vpack.c.b16 %v1185, %v1179
    %v1534 = vpack.c.b16 %v1192, %v1186
    %v1535 = vpack.c.b16 %v1193, %v1187
    %v1536 = vpack.c.b16 %v1194, %v1188
    %v1537 = vpack.c.b16 %v1195, %v1189
    %v1538 = vpack.c.b16 %v1196, %v1190
    %v1539 = vpack.c.b16 %v1197, %v1191
    %v1540 = vpack.c.b16 %v1204, %v1198
    %v1541 = vpack.c.b16 %v1205, %v1199
    %v1542 = vpack.c.b16 %v1206, %v1200
    %v1543 = vpack.c.b16 %v1207, %v1201
    %v1544 = vpack.c.b16 %v1208, %v1202
    %v1545 = vpack.c.b16 %v1209, %v1203
    %v1546 = vpack.c.b16 %v1216, %v1210
    %v1547 = vpack.c.b16 %v1217, %v1211
    %v1548 = vpack.c.b16 %v1218, %v1212
    %v1549 = vpack.c.b16 %v1219, %v1213
    %v1550 = vpack.c.b16 %v1220, %v1214
    %v1551 = vpack.c.b16 %v1221, %v1215
    %v1552 = vpack.c.b16 %v1228, %v1222
    %v1553 = vpack.c.b16 %v1229, %v1223
    %v1554 = vpack.c.b16 %v1230, %v1224
    %v1555 = vpack.c.b16 %v1231, %v1225
    %v1556 = vpack.c.b16 %v1232, %v1226
    %v1557 = vpack.c.b16 %v1233, %v1227
    %v1558 = vpack.c.b16 %v1240, %v1234
    %v1559 = vpack.c.b16 %v1241, %v1235
    %v1560 = vpack.c.b16 %v1242, %v1236
    %v1561 = vpack.c.b16 %v1243, %v1237
    %v1562 = vpack.c.b16 %v1244, %v1238
    %v1563 = vpack.c.b16 %v1245, %v1239
    %v1564 = vpack.c.b16 %v1252, %v1246
    %v1565 = vpack.c.b16 %v1253, %v1247
    %v1566 = vpack.c.b16 %v1254, %v1248
    %v1567 = vpack.c.b16 %v1255, %v1249
    %v1568 = vpack.c.b16 %v1256, %v1250
    %v1569 = vpack.c.b16 %v1257, %v1251
    %v1570 = vpack.c.b16 %v1264, %v1258
    %v1571 = vpack.c.b16 %v1265, %v1259
    %v1572 = vpack.c.b16 %v1266, %v1260
    %v1573 = vpack.c.b16 %v1267, %v1261
    %v1574 = vpack.c.b16 %v1268, %v1262
    %v1575 = vpack.c.b16 %v1269, %v1263
    %v1576 = vpack.c.b16 %v1276, %v1270
    %v1577 = vpack.c.b16 %v1277, %v1271
    %v1578 = vpack.c.b16 %v1278, %v1272
    %v1579 = vpack.c.b16 %v1279, %v1273
    %v1580 = vpack.c.b16 %v1280, %v1274
    %v1581 = vpack.c.b16 %v1281, %v1275
    %v1582 = vpack.c.b16 %v1288, %v1282
    %v1583 = vpack.c.b16 %v1289, %v1283
    %v1584 = vpack.c.b16 %v1290, %v1284
    %v1585 = vpack.c.b16 %v1291, %v1285
    %v1586 = vpack.c.b16 %v1292, %v1286
    %v1587 = vpack.c.b16 %v1293, %v1287
    %v1588 = vpack.c.b16 %v1300, %v1294
    %v1589 = vpack.c.b16 %v1301, %v1295
    %v1590 = vpack.c.b16 %v1302, %v1296
    %v1591 = vpack.c.b16 %v1303, %v1297
    %v1592 = vpack.c.b16 %v1304, %v1298
    %v1593 = vpack.c.b16 %v1305, %v1299
    %1882 = vmatpush.bf16.msra.mxu0 %v1348
    %1883 = vmatpush.bf16.msra.mxu0 %v1342
    %1884 = vmatpush.bf16.msra.mxu0 %v1336
    %1885 = vmatpush.bf16.msra.mxu0 %v1330
    %1886 = vmatpush.bf16.msra.mxu0 %v1324
    %1887 = vmatpush.bf16.msra.mxu0 %v1318
    %1888 = vmatpush.bf16.msra.mxu0 %v1312
    %1889 = vmatpush.bf16.msra.mxu0 %v1306
    %1890 = vmatmul.bf16.gmra.mxu0 %v134
    %v1891 = vpop.f32.mrf.mxu0
    %v1892 = vadd.f32 %v430, %v1891
    %v1893 = vpop.f32.mrf.mxu0
    %v1894 = vadd.f32 %v430, %v1893
    %1895 = vdwg.mxu0
    %1896 = vmatpush.bf16.msra.mxu0 %v1396
    %1897 = vmatpush.bf16.msra.mxu0 %v1390
    %1898 = vmatpush.bf16.msra.mxu0 %v1384
    %1899 = vmatpush.bf16.msra.mxu0 %v1378
    %1900 = vmatpush.bf16.msra.mxu0 %v1372
    %1901 = vmatpush.bf16.msra.mxu0 %v1366
    %1902 = vmatpush.bf16.msra.mxu0 %v1360
    %1903 = vmatpush.bf16.msra.mxu0 %v1354
    %1904 = vmatmul.bf16.gmra.mxu0 %v135
    %v1905 = vpop.f32.mrf.mxu0
    %v1906 = vadd.f32 %v1892, %v1905
    %v1907 = vpop.f32.mrf.mxu0
    %v1908 = vadd.f32 %v1894, %v1907
    %1909 = vdwg.mxu0
    %1910 = vmatpush.bf16.msra.mxu0 %v1444
    %1911 = vmatpush.bf16.msra.mxu0 %v1438
    %1912 = vmatpush.bf16.msra.mxu0 %v1432
    %1913 = vmatpush.bf16.msra.mxu0 %v1426
    %1914 = vmatpush.bf16.msra.mxu0 %v1420
    %1915 = vmatpush.bf16.msra.mxu0 %v1414
    %1916 = vmatpush.bf16.msra.mxu0 %v1408
    %1917 = vmatpush.bf16.msra.mxu0 %v1402
    %1918 = vmatmul.bf16.gmra.mxu0 %v136
    %v1919 = vpop.f32.mrf.mxu0
    %v1920 = vadd.f32 %v1906, %v1919
    %v1921 = vpop.f32.mrf.mxu0
    %v1922 = vadd.f32 %v1908, %v1921
    %1923 = vdwg.mxu0
    %1924 = vmatpush.bf16.msra.mxu0 %v1492
    %1925 = vmatpush.bf16.msra.mxu0 %v1486
    %1926 = vmatpush.bf16.msra.mxu0 %v1480
    %1927 = vmatpush.bf16.msra.mxu0 %v1474
    %1928 = vmatpush.bf16.msra.mxu0 %v1468
    %1929 = vmatpush.bf16.msra.mxu0 %v1462
    %1930 = vmatpush.bf16.msra.mxu0 %v1456
    %1931 = vmatpush.bf16.msra.mxu0 %v1450
    %1932 = vmatmul.bf16.gmra.mxu0 %v137
    %v1933 = vpop.f32.mrf.mxu0
    %v1934 = vadd.f32 %v1920, %v1933
    %v1935 = vpop.f32.mrf.mxu0
    %v1936 = vadd.f32 %v1922, %v1935
    %1937 = vdwg.mxu0
    %1938 = vmatpush.bf16.msra.mxu0 %v1540
    %1939 = vmatpush.bf16.msra.mxu0 %v1534
    %1940 = vmatpush.bf16.msra.mxu0 %v1528
    %1941 = vmatpush.bf16.msra.mxu0 %v1522
    %1942 = vmatpush.bf16.msra.mxu0 %v1516
    %1943 = vmatpush.bf16.msra.mxu0 %v1510
    %1944 = vmatpush.bf16.msra.mxu0 %v1504
    %1945 = vmatpush.bf16.msra.mxu0 %v1498
    %1946 = vmatmul.bf16.gmra.mxu0 %v138
    %v1947 = vpop.f32.mrf.mxu0
    %v1948 = vadd.f32 %v1934, %v1947
    %v1949 = vpop.f32.mrf.mxu0
    %v1950 = vadd.f32 %v1936, %v1949
    %1951 = vdwg.mxu0
    %1952 = vmatpush.bf16.msra.mxu0 %v1588
    %1953 = vmatpush.bf16.msra.mxu0 %v1582
    %1954 = vmatpush.bf16.msra.mxu0 %v1576
    %1955 = vmatpush.bf16.msra.mxu0 %v1570
    %1956 = vmatpush.bf16.msra.mxu0 %v1564
    %1957 = vmatpush.bf16.msra.mxu0 %v1558
    %1958 = vmatpush.bf16.msra.mxu0 %v1552
    %1959 = vmatpush.bf16.msra.mxu0 %v1546
    %1960 = vmatmul.bf16.gmra.mxu0 %v139
    %v1961 = vpop.f32.mrf.mxu0
    %v1962 = vadd.f32 %v1948, %v1961
    %v1963 = vpop.f32.mrf.mxu0
    %v1964 = vadd.f32 %v1950, %v1963
    %1965 = vdwg.mxu0
    %1966 = vmatpush.bf16.msra.mxu0 %v1349
    %1967 = vmatpush.bf16.msra.mxu0 %v1343
    %1968 = vmatpush.bf16.msra.mxu0 %v1337
    %1969 = vmatpush.bf16.msra.mxu0 %v1331
    %1970 = vmatpush.bf16.msra.mxu0 %v1325
    %1971 = vmatpush.bf16.msra.mxu0 %v1319
    %1972 = vmatpush.bf16.msra.mxu0 %v1313
    %1973 = vmatpush.bf16.msra.mxu0 %v1307
    %1974 = vmatmul.bf16.gmra.mxu0 %v134
    %v1975 = vpop.f32.mrf.mxu0
    %v1976 = vadd.f32 %v431, %v1975
    %v1977 = vpop.f32.mrf.mxu0
    %v1978 = vadd.f32 %v431, %v1977
    %1979 = vdwg.mxu0
    %1980 = vmatpush.bf16.msra.mxu0 %v1397
    %1981 = vmatpush.bf16.msra.mxu0 %v1391
    %1982 = vmatpush.bf16.msra.mxu0 %v1385
    %1983 = vmatpush.bf16.msra.mxu0 %v1379
    %1984 = vmatpush.bf16.msra.mxu0 %v1373
    %1985 = vmatpush.bf16.msra.mxu0 %v1367
    %1986 = vmatpush.bf16.msra.mxu0 %v1361
    %1987 = vmatpush.bf16.msra.mxu0 %v1355
    %1988 = vmatmul.bf16.gmra.mxu0 %v135
    %v1989 = vpop.f32.mrf.mxu0
    %v1990 = vadd.f32 %v1976, %v1989
    %v1991 = vpop.f32.mrf.mxu0
    %v1992 = vadd.f32 %v1978, %v1991
    %1993 = vdwg.mxu0
    %1994 = vmatpush.bf16.msra.mxu0 %v1445
    %1995 = vmatpush.bf16.msra.mxu0 %v1439
    %1996 = vmatpush.bf16.msra.mxu0 %v1433
    %1997 = vmatpush.bf16.msra.mxu0 %v1427
    %1998 = vmatpush.bf16.msra.mxu0 %v1421
    %1999 = vmatpush.bf16.msra.mxu0 %v1415
    %2000 = vmatpush.bf16.msra.mxu0 %v1409
    %2001 = vmatpush.bf16.msra.mxu0 %v1403
    %2002 = vmatmul.bf16.gmra.mxu0 %v136
    %v2003 = vpop.f32.mrf.mxu0
    %v2004 = vadd.f32 %v1990, %v2003
    %v2005 = vpop.f32.mrf.mxu0
    %v2006 = vadd.f32 %v1992, %v2005
    %2007 = vdwg.mxu0
    %2008 = vmatpush.bf16.msra.mxu0 %v1493
    %2009 = vmatpush.bf16.msra.mxu0 %v1487
    %2010 = vmatpush.bf16.msra.mxu0 %v1481
    %2011 = vmatpush.bf16.msra.mxu0 %v1475
    %2012 = vmatpush.bf16.msra.mxu0 %v1469
    %2013 = vmatpush.bf16.msra.mxu0 %v1463
    %2014 = vmatpush.bf16.msra.mxu0 %v1457
    %2015 = vmatpush.bf16.msra.mxu0 %v1451
    %2016 = vmatmul.bf16.gmra.mxu0 %v137
    %v2017 = vpop.f32.mrf.mxu0
    %v2018 = vadd.f32 %v2004, %v2017
    %v2019 = vpop.f32.mrf.mxu0
    %v2020 = vadd.f32 %v2006, %v2019
    %2021 = vdwg.mxu0
    %2022 = vmatpush.bf16.msra.mxu0 %v1541
    %2023 = vmatpush.bf16.msra.mxu0 %v1535
    %2024 = vmatpush.bf16.msra.mxu0 %v1529
    %2025 = vmatpush.bf16.msra.mxu0 %v1523
    %2026 = vmatpush.bf16.msra.mxu0 %v1517
    %2027 = vmatpush.bf16.msra.mxu0 %v1511
    %2028 = vmatpush.bf16.msra.mxu0 %v1505
    %2029 = vmatpush.bf16.msra.mxu0 %v1499
    %2030 = vmatmul.bf16.gmra.mxu0 %v138
    %v2031 = vpop.f32.mrf.mxu0
    %v2032 = vadd.f32 %v2018, %v2031
    %v2033 = vpop.f32.mrf.mxu0
    %v2034 = vadd.f32 %v2020, %v2033
    %2035 = vdwg.mxu0
    %2036 = vmatpush.bf16.msra.mxu0 %v1589
    %2037 = vmatpush.bf16.msra.mxu0 %v1583
    %2038 = vmatpush.bf16.msra.mxu0 %v1577
    %2039 = vmatpush.bf16.msra.mxu0 %v1571
    %2040 = vmatpush.bf16.msra.mxu0 %v1565
    %2041 = vmatpush.bf16.msra.mxu0 %v1559
    %2042 = vmatpush.bf16.msra.mxu0 %v1553
    %2043 = vmatpush.bf16.msra.mxu0 %v1547
    %2044 = vmatmul.bf16.gmra.mxu0 %v139
    %v2045 = vpop.f32.mrf.mxu0
    %v2046 = vadd.f32 %v2032, %v2045
    %v2047 = vpop.f32.mrf.mxu0
    %v2048 = vadd.f32 %v2034, %v2047
    %2049 = vdwg.mxu0
    %2050 = vmatpush.bf16.msra.mxu0 %v1350
    %2051 = vmatpush.bf16.msra.mxu0 %v1344
    %2052 = vmatpush.bf16.msra.mxu0 %v1338
    %2053 = vmatpush.bf16.msra.mxu0 %v1332
    %2054 = vmatpush.bf16.msra.mxu0 %v1326
    %2055 = vmatpush.bf16.msra.mxu0 %v1320
    %2056 = vmatpush.bf16.msra.mxu0 %v1314
    %2057 = vmatpush.bf16.msra.mxu0 %v1308
    %2058 = vmatmul.bf16.gmra.mxu0 %v134
    %v2059 = vpop.f32.mrf.mxu0
    %v2060 = vadd.f32 %v432, %v2059
    %v2061 = vpop.f32.mrf.mxu0
    %v2062 = vadd.f32 %v432, %v2061
    %2063 = vdwg.mxu0
    %2064 = vmatpush.bf16.msra.mxu0 %v1398
    %2065 = vmatpush.bf16.msra.mxu0 %v1392
    %2066 = vmatpush.bf16.msra.mxu0 %v1386
    %2067 = vmatpush.bf16.msra.mxu0 %v1380
    %2068 = vmatpush.bf16.msra.mxu0 %v1374
    %2069 = vmatpush.bf16.msra.mxu0 %v1368
    %2070 = vmatpush.bf16.msra.mxu0 %v1362
    %2071 = vmatpush.bf16.msra.mxu0 %v1356
    %2072 = vmatmul.bf16.gmra.mxu0 %v135
    %v2073 = vpop.f32.mrf.mxu0
    %v2074 = vadd.f32 %v2060, %v2073
    %v2075 = vpop.f32.mrf.mxu0
    %v2076 = vadd.f32 %v2062, %v2075
    %2077 = vdwg.mxu0
    %2078 = vmatpush.bf16.msra.mxu0 %v1446
    %2079 = vmatpush.bf16.msra.mxu0 %v1440
    %2080 = vmatpush.bf16.msra.mxu0 %v1434
    %2081 = vmatpush.bf16.msra.mxu0 %v1428
    %2082 = vmatpush.bf16.msra.mxu0 %v1422
    %2083 = vmatpush.bf16.msra.mxu0 %v1416
    %2084 = vmatpush.bf16.msra.mxu0 %v1410
    %2085 = vmatpush.bf16.msra.mxu0 %v1404
    %2086 = vmatmul.bf16.gmra.mxu0 %v136
    %v2087 = vpop.f32.mrf.mxu0
    %v2088 = vadd.f32 %v2074, %v2087
    %v2089 = vpop.f32.mrf.mxu0
    %v2090 = vadd.f32 %v2076, %v2089
    %2091 = vdwg.mxu0
    %2092 = vmatpush.bf16.msra.mxu0 %v1494
    %2093 = vmatpush.bf16.msra.mxu0 %v1488
    %2094 = vmatpush.bf16.msra.mxu0 %v1482
    %2095 = vmatpush.bf16.msra.mxu0 %v1476
    %2096 = vmatpush.bf16.msra.mxu0 %v1470
    %2097 = vmatpush.bf16.msra.mxu0 %v1464
    %2098 = vmatpush.bf16.msra.mxu0 %v1458
    %2099 = vmatpush.bf16.msra.mxu0 %v1452
    %2100 = vmatmul.bf16.gmra.mxu0 %v137
    %v2101 = vpop.f32.mrf.mxu0
    %v2102 = vadd.f32 %v2088, %v2101
    %v2103 = vpop.f32.mrf.mxu0
    %v2104 = vadd.f32 %v2090, %v2103
    %2105 = vdwg.mxu0
    %2106 = vmatpush.bf16.msra.mxu0 %v1542
    %2107 = vmatpush.bf16.msra.mxu0 %v1536
    %2108 = vmatpush.bf16.msra.mxu0 %v1530
    %2109 = vmatpush.bf16.msra.mxu0 %v1524
    %2110 = vmatpush.bf16.msra.mxu0 %v1518
    %2111 = vmatpush.bf16.msra.mxu0 %v1512
    %2112 = vmatpush.bf16.msra.mxu0 %v1506
    %2113 = vmatpush.bf16.msra.mxu0 %v1500
    %2114 = vmatmul.bf16.gmra.mxu0 %v138
    %v2115 = vpop.f32.mrf.mxu0
    %v2116 = vadd.f32 %v2102, %v2115
    %v2117 = vpop.f32.mrf.mxu0
    %v2118 = vadd.f32 %v2104, %v2117
    %2119 = vdwg.mxu0
    %2120 = vmatpush.bf16.msra.mxu0 %v1590
    %2121 = vmatpush.bf16.msra.mxu0 %v1584
    %2122 = vmatpush.bf16.msra.mxu0 %v1578
    %2123 = vmatpush.bf16.msra.mxu0 %v1572
    %2124 = vmatpush.bf16.msra.mxu0 %v1566
    %2125 = vmatpush.bf16.msra.mxu0 %v1560
    %2126 = vmatpush.bf16.msra.mxu0 %v1554
    %2127 = vmatpush.bf16.msra.mxu0 %v1548
    %2128 = vmatmul.bf16.gmra.mxu0 %v139
    %v2129 = vpop.f32.mrf.mxu0
    %v2130 = vadd.f32 %v2116, %v2129
    %v2131 = vpop.f32.mrf.mxu0
    %v2132 = vadd.f32 %v2118, %v2131
    %2133 = vdwg.mxu0
    %2134 = vmatpush.bf16.msra.mxu0 %v1351
    %2135 = vmatpush.bf16.msra.mxu0 %v1345
    %2136 = vmatpush.bf16.msra.mxu0 %v1339
    %2137 = vmatpush.bf16.msra.mxu0 %v1333
    %2138 = vmatpush.bf16.msra.mxu0 %v1327
    %2139 = vmatpush.bf16.msra.mxu0 %v1321
    %2140 = vmatpush.bf16.msra.mxu0 %v1315
    %2141 = vmatpush.bf16.msra.mxu0 %v1309
    %2142 = vmatmul.bf16.gmra.mxu0 %v134
    %v2143 = vpop.f32.mrf.mxu0
    %v2144 = vadd.f32 %v433, %v2143
    %v2145 = vpop.f32.mrf.mxu0
    %v2146 = vadd.f32 %v433, %v2145
    %2147 = vdwg.mxu0
    %2148 = vmatpush.bf16.msra.mxu0 %v1399
    %2149 = vmatpush.bf16.msra.mxu0 %v1393
    %2150 = vmatpush.bf16.msra.mxu0 %v1387
    %2151 = vmatpush.bf16.msra.mxu0 %v1381
    %2152 = vmatpush.bf16.msra.mxu0 %v1375
    %2153 = vmatpush.bf16.msra.mxu0 %v1369
    %2154 = vmatpush.bf16.msra.mxu0 %v1363
    %2155 = vmatpush.bf16.msra.mxu0 %v1357
    %2156 = vmatmul.bf16.gmra.mxu0 %v135
    %v2157 = vpop.f32.mrf.mxu0
    %v2158 = vadd.f32 %v2144, %v2157
    %v2159 = vpop.f32.mrf.mxu0
    %v2160 = vadd.f32 %v2146, %v2159
    %2161 = vdwg.mxu0
    %2162 = vmatpush.bf16.msra.mxu0 %v1447
    %2163 = vmatpush.bf16.msra.mxu0 %v1441
    %2164 = vmatpush.bf16.msra.mxu0 %v1435
    %2165 = vmatpush.bf16.msra.mxu0 %v1429
    %2166 = vmatpush.bf16.msra.mxu0 %v1423
    %2167 = vmatpush.bf16.msra.mxu0 %v1417
    %2168 = vmatpush.bf16.msra.mxu0 %v1411
    %2169 = vmatpush.bf16.msra.mxu0 %v1405
    %2170 = vmatmul.bf16.gmra.mxu0 %v136
    %v2171 = vpop.f32.mrf.mxu0
    %v2172 = vadd.f32 %v2158, %v2171
    %v2173 = vpop.f32.mrf.mxu0
    %v2174 = vadd.f32 %v2160, %v2173
    %2175 = vdwg.mxu0
    %2176 = vmatpush.bf16.msra.mxu0 %v1495
    %2177 = vmatpush.bf16.msra.mxu0 %v1489
    %2178 = vmatpush.bf16.msra.mxu0 %v1483
    %2179 = vmatpush.bf16.msra.mxu0 %v1477
    %2180 = vmatpush.bf16.msra.mxu0 %v1471
    %2181 = vmatpush.bf16.msra.mxu0 %v1465
    %2182 = vmatpush.bf16.msra.mxu0 %v1459
    %2183 = vmatpush.bf16.msra.mxu0 %v1453
    %2184 = vmatmul.bf16.gmra.mxu0 %v137
    %v2185 = vpop.f32.mrf.mxu0
    %v2186 = vadd.f32 %v2172, %v2185
    %v2187 = vpop.f32.mrf.mxu0
    %v2188 = vadd.f32 %v2174, %v2187
    %2189 = vdwg.mxu0
    %2190 = vmatpush.bf16.msra.mxu0 %v1543
    %2191 = vmatpush.bf16.msra.mxu0 %v1537
    %2192 = vmatpush.bf16.msra.mxu0 %v1531
    %2193 = vmatpush.bf16.msra.mxu0 %v1525
    %2194 = vmatpush.bf16.msra.mxu0 %v1519
    %2195 = vmatpush.bf16.msra.mxu0 %v1513
    %2196 = vmatpush.bf16.msra.mxu0 %v1507
    %2197 = vmatpush.bf16.msra.mxu0 %v1501
    %2198 = vmatmul.bf16.gmra.mxu0 %v138
    %v2199 = vpop.f32.mrf.mxu0
    %v2200 = vadd.f32 %v2186, %v2199
    %v2201 = vpop.f32.mrf.mxu0
    %v2202 = vadd.f32 %v2188, %v2201
    %2203 = vdwg.mxu0
    %2204 = vmatpush.bf16.msra.mxu0 %v1591
    %2205 = vmatpush.bf16.msra.mxu0 %v1585
    %2206 = vmatpush.bf16.msra.mxu0 %v1579
    %2207 = vmatpush.bf16.msra.mxu0 %v1573
    %2208 = vmatpush.bf16.msra.mxu0 %v1567
    %2209 = vmatpush.bf16.msra.mxu0 %v1561
    %2210 = vmatpush.bf16.msra.mxu0 %v1555
    %2211 = vmatpush.bf16.msra.mxu0 %v1549
    %2212 = vmatmul.bf16.gmra.mxu0 %v139
    %v2213 = vpop.f32.mrf.mxu0
    %v2214 = vadd.f32 %v2200, %v2213
    %v2215 = vpop.f32.mrf.mxu0
    %v2216 = vadd.f32 %v2202, %v2215
    %2217 = vdwg.mxu0
    %2218 = vmatpush.bf16.msra.mxu0 %v1352
    %2219 = vmatpush.bf16.msra.mxu0 %v1346
    %2220 = vmatpush.bf16.msra.mxu0 %v1340
    %2221 = vmatpush.bf16.msra.mxu0 %v1334
    %2222 = vmatpush.bf16.msra.mxu0 %v1328
    %2223 = vmatpush.bf16.msra.mxu0 %v1322
    %2224 = vmatpush.bf16.msra.mxu0 %v1316
    %2225 = vmatpush.bf16.msra.mxu0 %v1310
    %2226 = vmatmul.bf16.gmra.mxu0 %v134
    %v2227 = vpop.f32.mrf.mxu0
    %v2228 = vadd.f32 %v434, %v2227
    %v2229 = vpop.f32.mrf.mxu0
    %v2230 = vadd.f32 %v434, %v2229
    %2231 = vdwg.mxu0
    %2232 = vmatpush.bf16.msra.mxu0 %v1400
    %2233 = vmatpush.bf16.msra.mxu0 %v1394
    %2234 = vmatpush.bf16.msra.mxu0 %v1388
    %2235 = vmatpush.bf16.msra.mxu0 %v1382
    %2236 = vmatpush.bf16.msra.mxu0 %v1376
    %2237 = vmatpush.bf16.msra.mxu0 %v1370
    %2238 = vmatpush.bf16.msra.mxu0 %v1364
    %2239 = vmatpush.bf16.msra.mxu0 %v1358
    %2240 = vmatmul.bf16.gmra.mxu0 %v135
    %v2241 = vpop.f32.mrf.mxu0
    %v2242 = vadd.f32 %v2228, %v2241
    %v2243 = vpop.f32.mrf.mxu0
    %v2244 = vadd.f32 %v2230, %v2243
    %2245 = vdwg.mxu0
    %2246 = vmatpush.bf16.msra.mxu0 %v1448
    %2247 = vmatpush.bf16.msra.mxu0 %v1442
    %2248 = vmatpush.bf16.msra.mxu0 %v1436
    %2249 = vmatpush.bf16.msra.mxu0 %v1430
    %2250 = vmatpush.bf16.msra.mxu0 %v1424
    %2251 = vmatpush.bf16.msra.mxu0 %v1418
    %2252 = vmatpush.bf16.msra.mxu0 %v1412
    %2253 = vmatpush.bf16.msra.mxu0 %v1406
    %2254 = vmatmul.bf16.gmra.mxu0 %v136
    %v2255 = vpop.f32.mrf.mxu0
    %v2256 = vadd.f32 %v2242, %v2255
    %v2257 = vpop.f32.mrf.mxu0
    %v2258 = vadd.f32 %v2244, %v2257
    %2259 = vdwg.mxu0
    %2260 = vmatpush.bf16.msra.mxu0 %v1496
    %2261 = vmatpush.bf16.msra.mxu0 %v1490
    %2262 = vmatpush.bf16.msra.mxu0 %v1484
    %2263 = vmatpush.bf16.msra.mxu0 %v1478
    %2264 = vmatpush.bf16.msra.mxu0 %v1472
    %2265 = vmatpush.bf16.msra.mxu0 %v1466
    %2266 = vmatpush.bf16.msra.mxu0 %v1460
    %2267 = vmatpush.bf16.msra.mxu0 %v1454
    %2268 = vmatmul.bf16.gmra.mxu0 %v137
    %v2269 = vpop.f32.mrf.mxu0
    %v2270 = vadd.f32 %v2256, %v2269
    %v2271 = vpop.f32.mrf.mxu0
    %v2272 = vadd.f32 %v2258, %v2271
    %2273 = vdwg.mxu0
    %2274 = vmatpush.bf16.msra.mxu0 %v1544
    %2275 = vmatpush.bf16.msra.mxu0 %v1538
    %2276 = vmatpush.bf16.msra.mxu0 %v1532
    %2277 = vmatpush.bf16.msra.mxu0 %v1526
    %2278 = vmatpush.bf16.msra.mxu0 %v1520
    %2279 = vmatpush.bf16.msra.mxu0 %v1514
    %2280 = vmatpush.bf16.msra.mxu0 %v1508
    %2281 = vmatpush.bf16.msra.mxu0 %v1502
    %2282 = vmatmul.bf16.gmra.mxu0 %v138
    %v2283 = vpop.f32.mrf.mxu0
    %v2284 = vadd.f32 %v2270, %v2283
    %v2285 = vpop.f32.mrf.mxu0
    %v2286 = vadd.f32 %v2272, %v2285
    %2287 = vdwg.mxu0
    %2288 = vmatpush.bf16.msra.mxu0 %v1592
    %2289 = vmatpush.bf16.msra.mxu0 %v1586
    %2290 = vmatpush.bf16.msra.mxu0 %v1580
    %2291 = vmatpush.bf16.msra.mxu0 %v1574
    %2292 = vmatpush.bf16.msra.mxu0 %v1568
    %2293 = vmatpush.bf16.msra.mxu0 %v1562
    %2294 = vmatpush.bf16.msra.mxu0 %v1556
    %2295 = vmatpush.bf16.msra.mxu0 %v1550
    %2296 = vmatmul.bf16.gmra.mxu0 %v139
    %v2297 = vpop.f32.mrf.mxu0
    %v2298 = vadd.f32 %v2284, %v2297
    %v2299 = vpop.f32.mrf.mxu0
    %v2300 = vadd.f32 %v2286, %v2299
    %2301 = vdwg.mxu0
    %2302 = vmatpush.bf16.msra.mxu0 %v1353
    %2303 = vmatpush.bf16.msra.mxu0 %v1347
    %2304 = vmatpush.bf16.msra.mxu0 %v1341
    %2305 = vmatpush.bf16.msra.mxu0 %v1335
    %2306 = vmatpush.bf16.msra.mxu0 %v1329
    %2307 = vmatpush.bf16.msra.mxu0 %v1323
    %2308 = vmatpush.bf16.msra.mxu0 %v1317
    %2309 = vmatpush.bf16.msra.mxu0 %v1311
    %2310 = vmatmul.bf16.gmra.mxu0 %v134
    %v2311 = vpop.f32.mrf.mxu0
    %v2312 = vadd.f32 %v435, %v2311
    %v2313 = vpop.f32.mrf.mxu0
    %v2314 = vadd.f32 %v435, %v2313
    %2315 = vdwg.mxu0
    %2316 = vmatpush.bf16.msra.mxu0 %v1401
    %2317 = vmatpush.bf16.msra.mxu0 %v1395
    %2318 = vmatpush.bf16.msra.mxu0 %v1389
    %2319 = vmatpush.bf16.msra.mxu0 %v1383
    %2320 = vmatpush.bf16.msra.mxu0 %v1377
    %2321 = vmatpush.bf16.msra.mxu0 %v1371
    %2322 = vmatpush.bf16.msra.mxu0 %v1365
    %2323 = vmatpush.bf16.msra.mxu0 %v1359
    %2324 = vmatmul.bf16.gmra.mxu0 %v135
    %v2325 = vpop.f32.mrf.mxu0
    %v2326 = vadd.f32 %v2312, %v2325
    %v2327 = vpop.f32.mrf.mxu0
    %v2328 = vadd.f32 %v2314, %v2327
    %2329 = vdwg.mxu0
    %2330 = vmatpush.bf16.msra.mxu0 %v1449
    %2331 = vmatpush.bf16.msra.mxu0 %v1443
    %2332 = vmatpush.bf16.msra.mxu0 %v1437
    %2333 = vmatpush.bf16.msra.mxu0 %v1431
    %2334 = vmatpush.bf16.msra.mxu0 %v1425
    %2335 = vmatpush.bf16.msra.mxu0 %v1419
    %2336 = vmatpush.bf16.msra.mxu0 %v1413
    %2337 = vmatpush.bf16.msra.mxu0 %v1407
    %2338 = vmatmul.bf16.gmra.mxu0 %v136
    %v2339 = vpop.f32.mrf.mxu0
    %v2340 = vadd.f32 %v2326, %v2339
    %v2341 = vpop.f32.mrf.mxu0
    %v2342 = vadd.f32 %v2328, %v2341
    %2343 = vdwg.mxu0
    %2344 = vmatpush.bf16.msra.mxu0 %v1497
    %2345 = vmatpush.bf16.msra.mxu0 %v1491
    %2346 = vmatpush.bf16.msra.mxu0 %v1485
    %2347 = vmatpush.bf16.msra.mxu0 %v1479
    %2348 = vmatpush.bf16.msra.mxu0 %v1473
    %2349 = vmatpush.bf16.msra.mxu0 %v1467
    %2350 = vmatpush.bf16.msra.mxu0 %v1461
    %2351 = vmatpush.bf16.msra.mxu0 %v1455
    %2352 = vmatmul.bf16.gmra.mxu0 %v137
    %v2353 = vpop.f32.mrf.mxu0
    %v2354 = vadd.f32 %v2340, %v2353
    %v2355 = vpop.f32.mrf.mxu0
    %v2356 = vadd.f32 %v2342, %v2355
    %2357 = vdwg.mxu0
    %2358 = vmatpush.bf16.msra.mxu0 %v1545
    %2359 = vmatpush.bf16.msra.mxu0 %v1539
    %2360 = vmatpush.bf16.msra.mxu0 %v1533
    %2361 = vmatpush.bf16.msra.mxu0 %v1527
    %2362 = vmatpush.bf16.msra.mxu0 %v1521
    %2363 = vmatpush.bf16.msra.mxu0 %v1515
    %2364 = vmatpush.bf16.msra.mxu0 %v1509
    %2365 = vmatpush.bf16.msra.mxu0 %v1503
    %2366 = vmatmul.bf16.gmra.mxu0 %v138
    %v2367 = vpop.f32.mrf.mxu0
    %v2368 = vadd.f32 %v2354, %v2367
    %v2369 = vpop.f32.mrf.mxu0
    %v2370 = vadd.f32 %v2356, %v2369
    %2371 = vdwg.mxu0
    %2372 = vmatpush.bf16.msra.mxu0 %v1593
    %2373 = vmatpush.bf16.msra.mxu0 %v1587
    %2374 = vmatpush.bf16.msra.mxu0 %v1581
    %2375 = vmatpush.bf16.msra.mxu0 %v1575
    %2376 = vmatpush.bf16.msra.mxu0 %v1569
    %2377 = vmatpush.bf16.msra.mxu0 %v1563
    %2378 = vmatpush.bf16.msra.mxu0 %v1557
    %2379 = vmatpush.bf16.msra.mxu0 %v1551
    %2380 = vmatmul.bf16.gmra.mxu0 %v139
    %v2381 = vpop.f32.mrf.mxu0
    %v2382 = vadd.f32 %v2368, %v2381
    %v2383 = vpop.f32.mrf.mxu0
    %v2384 = vadd.f32 %v2370, %v2383
    %2385 = vdwg.mxu0
    %v2386 = vpack.c.bf16 %v1964, %v1962
    %v2387 = vpack.c.bf16 %v2048, %v2046
    %v2388 = vpack.c.bf16 %v2132, %v2130
    %v2389 = vpack.c.bf16 %v2216, %v2214
    %v2390 = vpack.c.bf16 %v2300, %v2298
    %v2391 = vpack.c.bf16 %v2384, %v2382
    %v2392 = vunpack.c.l.bf16 %v2386
    %v2393 = vunpack.c.l.bf16 %v2387
    %v2394 = vunpack.c.l.bf16 %v2388
    %v2395 = vunpack.c.l.bf16 %v2389
    %v2396 = vunpack.c.l.bf16 %v2390
    %v2397 = vunpack.c.l.bf16 %v2391
    %v2398 = vunpack.c.h.bf16 %v2386
    %v2399 = vunpack.c.h.bf16 %v2387
    %v2400 = vunpack.c.h.bf16 %v2388
    %v2401 = vunpack.c.h.bf16 %v2389
    %v2402 = vunpack.c.h.bf16 %v2390
    %v2403 = vunpack.c.h.bf16 %v2391
    %v2404 = vtanh.pop %v2392
    %v2405 = vtanh.pop %v2393
    %v2406 = vtanh.pop %v2394
    %v2407 = vtanh.pop %v2395
    %v2408 = vtanh.pop %v2396
    %v2409 = vtanh.pop %v2397
    %v2410 = vtanh.pop %v2398
    %v2411 = vtanh.pop %v2399
    %v2412 = vtanh.pop %v2400
    %v2413 = vtanh.pop %v2401
    %v2414 = vtanh.pop %v2402
    %v2415 = vtanh.pop %v2403
    %v2416 = vpack.c.bf16 %v2410, %v2404
    %v2417 = vpack.c.bf16 %v2411, %v2405
    %v2418 = vpack.c.bf16 %v2412, %v2406
    %v2419 = vpack.c.bf16 %v2413, %v2407
    %v2420 = vpack.c.bf16 %v2414, %v2408
    %v2421 = vpack.c.bf16 %v2415, %v2409
    %v2422 = vld [vmem:[#allocation10] sm:$0xf]
    %v2423 = vld [vmem:[#allocation10 + $0x4] sm:$0xf]
    %v2424 = vld [vmem:[#allocation10 + $0x8] sm:$0xf]
    %v2425 = vld [vmem:[#allocation10 + $0xc] sm:$0xf]
    %v2426 = vld [vmem:[#allocation10 + $0x10] sm:$0xf]
    %v2427 = vld [vmem:[#allocation10 + $0x14] sm:$0xf]
    %v2428 = vld [vmem:[#allocation10 + $0x18] sm:$0xf]
    %v2429 = vld [vmem:[#allocation10 + $0x1c] sm:$0xf]
    %v2430 = vld [vmem:[#allocation10 + $0x20] sm:$0xf]
    %v2431 = vld [vmem:[#allocation10 + $0x24] sm:$0xf]
    %v2432 = vld [vmem:[#allocation10 + $0x28] sm:$0xf]
    %v2433 = vld [vmem:[#allocation10 + $0x2c] sm:$0xf]
    %v2434 = vld [vmem:[#allocation10 + $0x30] sm:$0xf]
    %v2435 = vld [vmem:[#allocation10 + $0x34] sm:$0xf]
    %v2436 = vld [vmem:[#allocation10 + $0x38] sm:$0xf]
    %v2437 = vld [vmem:[#allocation10 + $0x3c] sm:$0xf]
    %v2438 = vld [vmem:[#allocation10 + $0x40] sm:$0xf]
    %v2439 = vld [vmem:[#allocation10 + $0x44] sm:$0xf]
    %v2440 = vld [vmem:[#allocation10 + $0x48] sm:$0xf]
    %v2441 = vld [vmem:[#allocation10 + $0x4c] sm:$0xf]
    %v2442 = vld [vmem:[#allocation10 + $0x50] sm:$0xf]
    %v2443 = vld [vmem:[#allocation10 + $0x54] sm:$0xf]
    %v2444 = vld [vmem:[#allocation10 + $0x58] sm:$0xf]
    %v2445 = vld [vmem:[#allocation10 + $0x5c] sm:$0xf]
    %v2446 = vld [vmem:[#allocation10 + $0x60] sm:$0xf]
    %v2447 = vld [vmem:[#allocation10 + $0x64] sm:$0xf]
    %v2448 = vld [vmem:[#allocation10 + $0x68] sm:$0xf]
    %v2449 = vld [vmem:[#allocation10 + $0x6c] sm:$0xf]
    %v2450 = vld [vmem:[#allocation10 + $0x70] sm:$0xf]
    %v2451 = vld [vmem:[#allocation10 + $0x74] sm:$0xf]
    %v2452 = vld [vmem:[#allocation10 + $0x78] sm:$0xf]
    %v2453 = vld [vmem:[#allocation10 + $0x7c] sm:$0xf]
    %v2454 = vld [vmem:[#allocation10 + $0x80] sm:$0xf]
    %v2455 = vld [vmem:[#allocation10 + $0x84] sm:$0xf]
    %v2456 = vld [vmem:[#allocation10 + $0x88] sm:$0xf]
    %v2457 = vld [vmem:[#allocation10 + $0x8c] sm:$0xf]
    %v2458 = vld [vmem:[#allocation10 + $0x90] sm:$0xf]
    %v2459 = vld [vmem:[#allocation10 + $0x94] sm:$0xf]
    %v2460 = vld [vmem:[#allocation10 + $0x98] sm:$0xf]
    %v2461 = vld [vmem:[#allocation10 + $0x9c] sm:$0xf]
    %v2462 = vld [vmem:[#allocation10 + $0xa0] sm:$0xf]
    %v2463 = vld [vmem:[#allocation10 + $0xa4] sm:$0xf]
    %v2464 = vld [vmem:[#allocation10 + $0xa8] sm:$0xf]
    %v2465 = vld [vmem:[#allocation10 + $0xac] sm:$0xf]
    %v2466 = vld [vmem:[#allocation10 + $0xb0] sm:$0xf]
    %v2467 = vld [vmem:[#allocation10 + $0xb4] sm:$0xf]
    %v2468 = vld [vmem:[#allocation10 + $0xb8] sm:$0xf]
    %v2469 = vld [vmem:[#allocation10 + $0xbc] sm:$0xf]
    %v2470 = vld [vmem:[#allocation10 + $0xc0] sm:$0xf]
    %v2471 = vld [vmem:[#allocation10 + $0xc4] sm:$0xf]
    %v2472 = vld [vmem:[#allocation10 + $0xc8] sm:$0xf]
    %v2473 = vld [vmem:[#allocation10 + $0xcc] sm:$0xf]
    %v2474 = vld [vmem:[#allocation10 + $0xd0] sm:$0xf]
    %v2475 = vld [vmem:[#allocation10 + $0xd4] sm:$0xf]
    %v2476 = vld [vmem:[#allocation10 + $0xd8] sm:$0xf]
    %v2477 = vld [vmem:[#allocation10 + $0xdc] sm:$0xf]
    %v2478 = vld [vmem:[#allocation10 + $0xe0] sm:$0xf]
    %v2479 = vld [vmem:[#allocation10 + $0xe4] sm:$0xf]
    %v2480 = vld [vmem:[#allocation10 + $0xe8] sm:$0xf]
    %v2481 = vld [vmem:[#allocation10 + $0xec] sm:$0xf]
    %v2482 = vld [vmem:[#allocation10 + $0xf0] sm:$0xf]
    %v2483 = vld [vmem:[#allocation10 + $0xf4] sm:$0xf]
    %v2484 = vld [vmem:[#allocation10 + $0xf8] sm:$0xf]
    %v2485 = vld [vmem:[#allocation10 + $0xfc] sm:$0xf]
    %v2486 = vld [vmem:[#allocation10 + $0x100] sm:$0xf]
    %v2487 = vld [vmem:[#allocation10 + $0x104] sm:$0xf]
    %v2488 = vld [vmem:[#allocation10 + $0x108] sm:$0xf]
    %v2489 = vld [vmem:[#allocation10 + $0x10c] sm:$0xf]
    %v2490 = vld [vmem:[#allocation10 + $0x110] sm:$0xf]
    %v2491 = vld [vmem:[#allocation10 + $0x114] sm:$0xf]
    %v2492 = vld [vmem:[#allocation10 + $0x118] sm:$0xf]
    %v2493 = vld [vmem:[#allocation10 + $0x11c] sm:$0xf]
    %v2494 = vld [vmem:[#allocation10 + $0x120] sm:$0xf]
    %v2495 = vld [vmem:[#allocation10 + $0x124] sm:$0xf]
    %v2496 = vld [vmem:[#allocation10 + $0x128] sm:$0xf]
    %v2497 = vld [vmem:[#allocation10 + $0x12c] sm:$0xf]
    %v2498 = vld [vmem:[#allocation10 + $0x130] sm:$0xf]
    %v2499 = vld [vmem:[#allocation10 + $0x134] sm:$0xf]
    %v2500 = vld [vmem:[#allocation10 + $0x138] sm:$0xf]
    %v2501 = vld [vmem:[#allocation10 + $0x13c] sm:$0xf]
    %v2502 = vld [vmem:[#allocation10 + $0x140] sm:$0xf]
    %v2503 = vld [vmem:[#allocation10 + $0x144] sm:$0xf]
    %v2504 = vld [vmem:[#allocation10 + $0x148] sm:$0xf]
    %v2505 = vld [vmem:[#allocation10 + $0x14c] sm:$0xf]
    %v2506 = vld [vmem:[#allocation10 + $0x150] sm:$0xf]
    %v2507 = vld [vmem:[#allocation10 + $0x154] sm:$0xf]
    %v2508 = vld [vmem:[#allocation10 + $0x158] sm:$0xf]
    %v2509 = vld [vmem:[#allocation10 + $0x15c] sm:$0xf]
    %v2510 = vld [vmem:[#allocation10 + $0x160] sm:$0xf]
    %v2511 = vld [vmem:[#allocation10 + $0x164] sm:$0xf]
    %v2512 = vld [vmem:[#allocation10 + $0x168] sm:$0xf]
    %v2513 = vld [vmem:[#allocation10 + $0x16c] sm:$0xf]
    %v2514 = vld [vmem:[#allocation10 + $0x170] sm:$0xf]
    %v2515 = vld [vmem:[#allocation10 + $0x174] sm:$0xf]
    %v2516 = vld [vmem:[#allocation10 + $0x178] sm:$0xf]
    %v2517 = vld [vmem:[#allocation10 + $0x17c] sm:$0xf]
    %v2518 = vld [vmem:[#allocation11] sm:$0x1]
    %v2520 = vperm.slane %v2518, 0
    %v2618 = vunpack.c.l.b16 %v2422
    %v2619 = vunpack.c.l.b16 %v2423
    %v2620 = vunpack.c.l.b16 %v2424
    %v2621 = vunpack.c.l.b16 %v2425
    %v2622 = vunpack.c.l.b16 %v2426
    %v2623 = vunpack.c.l.b16 %v2427
    %v2624 = vunpack.c.l.b16 %v2428
    %v2625 = vunpack.c.l.b16 %v2429
    %v2626 = vunpack.c.l.b16 %v2430
    %v2627 = vunpack.c.l.b16 %v2431
    %v2628 = vunpack.c.l.b16 %v2432
    %v2629 = vunpack.c.l.b16 %v2433
    %v2630 = vunpack.c.l.b16 %v2434
    %v2631 = vunpack.c.l.b16 %v2435
    %v2632 = vunpack.c.l.b16 %v2436
    %v2633 = vunpack.c.l.b16 %v2437
    %v2634 = vunpack.c.l.b16 %v2438
    %v2635 = vunpack.c.l.b16 %v2439
    %v2636 = vunpack.c.l.b16 %v2440
    %v2637 = vunpack.c.l.b16 %v2441
    %v2638 = vunpack.c.l.b16 %v2442
    %v2639 = vunpack.c.l.b16 %v2443
    %v2640 = vunpack.c.l.b16 %v2444
    %v2641 = vunpack.c.l.b16 %v2445
    %v2642 = vunpack.c.l.b16 %v2446
    %v2643 = vunpack.c.l.b16 %v2447
    %v2644 = vunpack.c.l.b16 %v2448
    %v2645 = vunpack.c.l.b16 %v2449
    %v2646 = vunpack.c.l.b16 %v2450
    %v2647 = vunpack.c.l.b16 %v2451
    %v2648 = vunpack.c.l.b16 %v2452
    %v2649 = vunpack.c.l.b16 %v2453
    %v2650 = vunpack.c.l.b16 %v2454
    %v2651 = vunpack.c.l.b16 %v2455
    %v2652 = vunpack.c.l.b16 %v2456
    %v2653 = vunpack.c.l.b16 %v2457
    %v2654 = vunpack.c.l.b16 %v2458
    %v2655 = vunpack.c.l.b16 %v2459
    %v2656 = vunpack.c.l.b16 %v2460
    %v2657 = vunpack.c.l.b16 %v2461
    %v2658 = vunpack.c.l.b16 %v2462
    %v2659 = vunpack.c.l.b16 %v2463
    %v2660 = vunpack.c.l.b16 %v2464
    %v2661 = vunpack.c.l.b16 %v2465
    %v2662 = vunpack.c.l.b16 %v2466
    %v2663 = vunpack.c.l.b16 %v2467
    %v2664 = vunpack.c.l.b16 %v2468
    %v2665 = vunpack.c.l.b16 %v2469
    %v2666 = vunpack.c.l.b16 %v2470
    %v2667 = vunpack.c.l.b16 %v2471
    %v2668 = vunpack.c.l.b16 %v2472
    %v2669 = vunpack.c.l.b16 %v2473
    %v2670 = vunpack.c.l.b16 %v2474
    %v2671 = vunpack.c.l.b16 %v2475
    %v2672 = vunpack.c.l.b16 %v2476
    %v2673 = vunpack.c.l.b16 %v2477
    %v2674 = vunpack.c.l.b16 %v2478
    %v2675 = vunpack.c.l.b16 %v2479
    %v2676 = vunpack.c.l.b16 %v2480
    %v2677 = vunpack.c.l.b16 %v2481
    %v2678 = vunpack.c.l.b16 %v2482
    %v2679 = vunpack.c.l.b16 %v2483
    %v2680 = vunpack.c.l.b16 %v2484
    %v2681 = vunpack.c.l.b16 %v2485
    %v2682 = vunpack.c.l.b16 %v2486
    %v2683 = vunpack.c.l.b16 %v2487
    %v2684 = vunpack.c.l.b16 %v2488
    %v2685 = vunpack.c.l.b16 %v2489
    %v2686 = vunpack.c.l.b16 %v2490
    %v2687 = vunpack.c.l.b16 %v2491
    %v2688 = vunpack.c.l.b16 %v2492
    %v2689 = vunpack.c.l.b16 %v2493
    %v2690 = vunpack.c.l.b16 %v2494
    %v2691 = vunpack.c.l.b16 %v2495
    %v2692 = vunpack.c.l.b16 %v2496
    %v2693 = vunpack.c.l.b16 %v2497
    %v2694 = vunpack.c.l.b16 %v2498
    %v2695 = vunpack.c.l.b16 %v2499
    %v2696 = vunpack.c.l.b16 %v2500
    %v2697 = vunpack.c.l.b16 %v2501
    %v2698 = vunpack.c.l.b16 %v2502
    %v2699 = vunpack.c.l.b16 %v2503
    %v2700 = vunpack.c.l.b16 %v2504
    %v2701 = vunpack.c.l.b16 %v2505
    %v2702 = vunpack.c.l.b16 %v2506
    %v2703 = vunpack.c.l.b16 %v2507
    %v2704 = vunpack.c.l.b16 %v2508
    %v2705 = vunpack.c.l.b16 %v2509
    %v2706 = vunpack.c.l.b16 %v2510
    %v2707 = vunpack.c.l.b16 %v2511
    %v2708 = vunpack.c.l.b16 %v2512
    %v2709 = vunpack.c.l.b16 %v2513
    %v2710 = vunpack.c.l.b16 %v2514
    %v2711 = vunpack.c.l.b16 %v2515
    %v2712 = vunpack.c.l.b16 %v2516
    %v2713 = vunpack.c.l.b16 %v2517
    %v2714 = vpack.c.b16 %v2619, %v2618
    %v2715 = vpack.c.b16 %v2621, %v2620
    %v2716 = vpack.c.b16 %v2623, %v2622
    %v2717 = vpack.c.b16 %v2625, %v2624
    %v2718 = vpack.c.b16 %v2627, %v2626
    %v2719 = vpack.c.b16 %v2629, %v2628
    %v2720 = vpack.c.b16 %v2631, %v2630
    %v2721 = vpack.c.b16 %v2633, %v2632
    %v2722 = vpack.c.b16 %v2635, %v2634
    %v2723 = vpack.c.b16 %v2637, %v2636
    %v2724 = vpack.c.b16 %v2639, %v2638
    %v2725 = vpack.c.b16 %v2641, %v2640
    %v2726 = vpack.c.b16 %v2643, %v2642
    %v2727 = vpack.c.b16 %v2645, %v2644
    %v2728 = vpack.c.b16 %v2647, %v2646
    %v2729 = vpack.c.b16 %v2649, %v2648
    %v2730 = vpack.c.b16 %v2651, %v2650
    %v2731 = vpack.c.b16 %v2653, %v2652
    %v2732 = vpack.c.b16 %v2655, %v2654
    %v2733 = vpack.c.b16 %v2657, %v2656
    %v2734 = vpack.c.b16 %v2659, %v2658
    %v2735 = vpack.c.b16 %v2661, %v2660
    %v2736 = vpack.c.b16 %v2663, %v2662
    %v2737 = vpack.c.b16 %v2665, %v2664
    %v2738 = vpack.c.b16 %v2667, %v2666
    %v2739 = vpack.c.b16 %v2669, %v2668
    %v2740 = vpack.c.b16 %v2671, %v2670
    %v2741 = vpack.c.b16 %v2673, %v2672
    %v2742 = vpack.c.b16 %v2675, %v2674
    %v2743 = vpack.c.b16 %v2677, %v2676
    %v2744 = vpack.c.b16 %v2679, %v2678
    %v2745 = vpack.c.b16 %v2681, %v2680
    %v2746 = vpack.c.b16 %v2683, %v2682
    %v2747 = vpack.c.b16 %v2685, %v2684
    %v2748 = vpack.c.b16 %v2687, %v2686
    %v2749 = vpack.c.b16 %v2689, %v2688
    %v2750 = vpack.c.b16 %v2691, %v2690
    %v2751 = vpack.c.b16 %v2693, %v2692
    %v2752 = vpack.c.b16 %v2695, %v2694
    %v2753 = vpack.c.b16 %v2697, %v2696
    %v2754 = vpack.c.b16 %v2699, %v2698
    %v2755 = vpack.c.b16 %v2701, %v2700
    %v2756 = vpack.c.b16 %v2703, %v2702
    %v2757 = vpack.c.b16 %v2705, %v2704
    %v2758 = vpack.c.b16 %v2707, %v2706
    %v2759 = vpack.c.b16 %v2709, %v2708
    %v2760 = vpack.c.b16 %v2711, %v2710
    %v2761 = vpack.c.b16 %v2713, %v2712
    %2810 = vmatpush.bf16.msra.mxu0 %v2721
    %2811 = vmatpush.bf16.msra.mxu0 %v2720
    %2812 = vmatpush.bf16.msra.mxu0 %v2719
    %2813 = vmatpush.bf16.msra.mxu0 %v2718
    %2814 = vmatpush.bf16.msra.mxu0 %v2717
    %2815 = vmatpush.bf16.msra.mxu0 %v2716
    %2816 = vmatpush.bf16.msra.mxu0 %v2715
    %2817 = vmatpush.bf16.msra.mxu0 %v2714
    %2818 = vmatmul.bf16.gmra.mxu0 %v2416
    %v2819 = vpop.f32.mrf.mxu0
    %v2820 = vadd.f32 %v2520, %v2819
    %v2821 = vpop.f32.mrf.mxu0
    %v2822 = vadd.f32 %v2520, %v2821
    %2823 = vdwg.mxu0
    %2824 = vmatpush.bf16.msra.mxu0 %v2729
    %2825 = vmatpush.bf16.msra.mxu0 %v2728
    %2826 = vmatpush.bf16.msra.mxu0 %v2727
    %2827 = vmatpush.bf16.msra.mxu0 %v2726
    %2828 = vmatpush.bf16.msra.mxu0 %v2725
    %2829 = vmatpush.bf16.msra.mxu0 %v2724
    %2830 = vmatpush.bf16.msra.mxu0 %v2723
    %2831 = vmatpush.bf16.msra.mxu0 %v2722
    %2832 = vmatmul.bf16.gmra.mxu0 %v2417
    %v2833 = vpop.f32.mrf.mxu0
    %v2834 = vadd.f32 %v2820, %v2833
    %v2835 = vpop.f32.mrf.mxu0
    %v2836 = vadd.f32 %v2822, %v2835
    %2837 = vdwg.mxu0
    %2838 = vmatpush.bf16.msra.mxu0 %v2737
    %2839 = vmatpush.bf16.msra.mxu0 %v2736
    %2840 = vmatpush.bf16.msra.mxu0 %v2735
    %2841 = vmatpush.bf16.msra.mxu0 %v2734
    %2842 = vmatpush.bf16.msra.mxu0 %v2733
    %2843 = vmatpush.bf16.msra.mxu0 %v2732
    %2844 = vmatpush.bf16.msra.mxu0 %v2731
    %2845 = vmatpush.bf16.msra.mxu0 %v2730
    %2846 = vmatmul.bf16.gmra.mxu0 %v2418
    %v2847 = vpop.f32.mrf.mxu0
    %v2848 = vadd.f32 %v2834, %v2847
    %v2849 = vpop.f32.mrf.mxu0
    %v2850 = vadd.f32 %v2836, %v2849
    %2851 = vdwg.mxu0
    %2852 = vmatpush.bf16.msra.mxu0 %v2745
    %2853 = vmatpush.bf16.msra.mxu0 %v2744
    %2854 = vmatpush.bf16.msra.mxu0 %v2743
    %2855 = vmatpush.bf16.msra.mxu0 %v2742
    %2856 = vmatpush.bf16.msra.mxu0 %v2741
    %2857 = vmatpush.bf16.msra.mxu0 %v2740
    %2858 = vmatpush.bf16.msra.mxu0 %v2739
    %2859 = vmatpush.bf16.msra.mxu0 %v2738
    %2860 = vmatmul.bf16.gmra.mxu0 %v2419
    %v2861 = vpop.f32.mrf.mxu0
    %v2862 = vadd.f32 %v2848, %v2861
    %v2863 = vpop.f32.mrf.mxu0
    %v2864 = vadd.f32 %v2850, %v2863
    %2865 = vdwg.mxu0
    %2866 = vmatpush.bf16.msra.mxu0 %v2753
    %2867 = vmatpush.bf16.msra.mxu0 %v2752
    %2868 = vmatpush.bf16.msra.mxu0 %v2751
    %2869 = vmatpush.bf16.msra.mxu0 %v2750
    %2870 = vmatpush.bf16.msra.mxu0 %v2749
    %2871 = vmatpush.bf16.msra.mxu0 %v2748
    %2872 = vmatpush.bf16.msra.mxu0 %v2747
    %2873 = vmatpush.bf16.msra.mxu0 %v2746
    %2874 = vmatmul.bf16.gmra.mxu0 %v2420
    %v2875 = vpop.f32.mrf.mxu0
    %v2876 = vadd.f32 %v2862, %v2875
    %v2877 = vpop.f32.mrf.mxu0
    %v2878 = vadd.f32 %v2864, %v2877
    %2879 = vdwg.mxu0
    %2880 = vmatpush.bf16.msra.mxu0 %v2761
    %2881 = vmatpush.bf16.msra.mxu0 %v2760
    %2882 = vmatpush.bf16.msra.mxu0 %v2759
    %2883 = vmatpush.bf16.msra.mxu0 %v2758
    %2884 = vmatpush.bf16.msra.mxu0 %v2757
    %2885 = vmatpush.bf16.msra.mxu0 %v2756
    %2886 = vmatpush.bf16.msra.mxu0 %v2755
    %2887 = vmatpush.bf16.msra.mxu0 %v2754
    %2888 = vmatmul.bf16.gmra.mxu0 %v2421
    %v2889 = vpop.f32.mrf.mxu0
    %v2890 = vadd.f32 %v2876, %v2889
    %v2891 = vpop.f32.mrf.mxu0
    %v2892 = vadd.f32 %v2878, %v2891
    %2893 = vdwg.mxu0
    %v2894 = vpack.c.bf16 %v2890, %v2890
    %v2895 = vpack.c.bf16 %v2892, %v2892
    %2896 = vst [vmem:[%s6] sm:$0xf] %v2894
    %2897 = vst [vmem:[%s6 + $0x4] sm:$0xf] %v2895
    // Predicated region
    $region48: #{bert_classifier_forward.1} parent=1 // pred_check
      _
    $region49: #{bert_classifier_forward.1} parent=1 // pred_check_branch
      %2899 = sbr.rel (0) target = $region51
    $region50: #{bert_classifier_forward.1} parent=1 // pred_region
      _
    $region51: #{bert_classifier_forward.1} parent=1 // pred_fallthru
      _
    // Predicated region
    $region52: #{bert_classifier_forward.1} parent=1 // pred_check
      _
    $region53: #{bert_classifier_forward.1} parent=1 // pred_check_branch
      %2901 = sbr.rel (0) target = $region55
    $region54: #{bert_classifier_forward.1} parent=1 // pred_region
      _
    $region55: #{bert_classifier_forward.1} parent=1 // pred_fallthru
      _
    %2902 = vsyncpa [#allocation7], 1
    %2903 = vsyncpa [#allocation9], 1
    %2904 = vsyncpa [#allocation12], 1
  %2905 = vsyncmov [#allocation3]
  %s2906 = vpop.sfrf %2905
  %p2907 = scmp.eq.s32.totalorder %s2906, 0
  %p2908 = pneg %p2907
  %2910 = shalt.err (%p2908)

</llo_original>
